<compile_context>
chip_gen: v7x
topology: tpu7x:2x2x1
jax: 0.10.0
libtpu: 0.0.40
codegen_flags: <defaults>
</compile_context>

<pallas_src>
import functools
import math

import jax
import jax.numpy as jnp
from jax import lax
from jax.experimental import pallas as pl
from jax.experimental.pallas import tpu as pltpu


# ----------------------------------------------------------------------------
# Fused MHAtt kernel: one grid step == B_TILE batch elements, all heads inside.
# ----------------------------------------------------------------------------
def _mhatt_kernel(q_ref, k_ref, v_ref, mask_ref,
                  wq_ref, bq_ref, wk_ref, bk_ref,
                  wv_ref, bv_ref, wm_ref, bm_ref,
                  o_ref,
                  q_s, k_s, v_s, att_s,
                  *, n_head, d_head, b_tile, sq, sk):
    f32 = jnp.float32
    neg_big = jnp.float32(-1.0e9)

    # --- Q/K/V projections on the whole (B_TILE*S, H) row slab --------------
    # bf16 operands feed the MXU, f32 accumulation.  The 1/sqrt(d_head)
    # softmax scale is already folded into wq/bq by the wrapper.
    q_s[...] = jnp.dot(q_ref[...], wq_ref[...], preferred_element_type=f32) + bq_ref[...]
    k_s[...] = jnp.dot(k_ref[...], wk_ref[...], preferred_element_type=f32) + bk_ref[...]
    v_s[...] = jnp.dot(v_ref[...], wv_ref[...], preferred_element_type=f32) + bv_ref[...]

    # --- Per-batch-element attention (heads statically unrolled) ------------
    # TODO(synk): at large S the K=d_head MXU contraction depth (64 at H=512)
    # underfills the 256-deep array on v6e/v7x; pack two heads per pass if the
    # attention matmuls ever dominate (second-order at S~100).
    def batch_body(b, carry):
        rq = pl.multiple_of(b * sq, sq)
        rk = pl.multiple_of(b * sk, sk)

        # masked_fill mask, broadcast ONCE per batch element and reused by all
        # heads (JAX does not CSE broadcast_in_dim).
        pad = jnp.broadcast_to(mask_ref[b] > 0.5, (sq, sk))        # (Sq, Sk) bool

        for h in range(n_head):
            c0 = h * d_head
            qh = q_s[pl.ds(rq, sq), pl.ds(c0, d_head)]             # (Sq, d) f32
            kh = k_s[pl.ds(rk, sk), pl.ds(c0, d_head)]             # (Sk, d) f32
            vh = v_s[pl.ds(rk, sk), pl.ds(c0, d_head)]             # (Sk, d) f32

            # scores = q . k^T  (contract last dims; no materialized transpose)
            s = lax.dot_general(qh, kh, (((1,), (1,)), ((), ())),
                                preferred_element_type=f32)        # (Sq, Sk)
            s = jnp.where(pad, neg_big, s)                         # masked_fill
            s = s - jnp.max(s, axis=-1, keepdims=True)             # f32 softmax
            p = jnp.exp(s)
            p = p * pl.reciprocal(jnp.sum(p, axis=-1, keepdims=True), approx=True)
            # TODO(synk): training-mode dropout on the attention map is not
            # implemented (identity in eval mode).
            oh = jnp.dot(p, vh, preferred_element_type=f32)        # (Sq, d)
            # write to the (B_TILE*Sq, H) scratch at its static lane offset
            att_s[pl.ds(rq, sq), pl.ds(c0, d_head)] = oh
        return carry

    lax.fori_loop(0, b_tile, batch_body, 0, unroll=True)

    # --- Merge projection on the whole (B_TILE*Sq, H) slab, lane-dense store.
    atted = att_s[...].astype(jnp.bfloat16)
    o_ref[...] = (jnp.dot(atted, wm_ref[...], preferred_element_type=f32)
                  + bm_ref[...])


# ----------------------------------------------------------------------------
# Tile sizing / VMEM budgeting
# ----------------------------------------------------------------------------
def _vmem_bytes_estimate(b_tile, sq, sk, H):
    bf16, f32 = 2, 4
    rows_q, rows_k = b_tile * sq, b_tile * sk
    io = 2 * (rows_q * H * bf16            # q in   (double-buffered)
              + 2 * rows_k * H * bf16      # k, v in
              + rows_q * H * f32           # out
              + b_tile * sk * f32)         # mask
    # TODO(synk): constant-index weight specs still get double buffers; request
    # pl.Buffered(1) on them for ~2 MiB back at H=512 if VMEM ever binds.
    weights = 2 * (4 * H * H * bf16 + 4 * H * f32)
    scratch = (rows_q + 2 * rows_k) * H * f32 + rows_q * H * f32
    return io + weights + scratch


def _pick_b_tile(B, sq, sk, H, max_tile=8, vmem_budget=40 * 1024 * 1024):
    """Largest batch tile that (a) divides B, (b) leaves >= 2 grid steps when
    B >= 2 (v7x has two TensorCores), (c) fits a v7x-safe VMEM budget."""
    best = 1
    for t in range(1, min(B, max_tile) + 1):
        if B % t != 0:
            continue
        if B >= 2 and (B // t) < 2:
            continue
        if _vmem_bytes_estimate(t, sq, sk, H) > vmem_budget:
            continue
        best = t
    return best


# ----------------------------------------------------------------------------
# Wrapper: MHAtt.forward(v, k, q, mask) -> (B, Sq, H). One pallas_call.
# ----------------------------------------------------------------------------
def mhatt_pallas(params, v_in, k_in, q_in, mask, n_head, b_tile=None):
    B, Sq, H = q_in.shape
    Sk = k_in.shape[1]
    d_head = H // n_head
    scale = 1.0 / math.sqrt(d_head)

    if b_tile is None:
        b_tile = _pick_b_tile(B, Sq, Sk, H)
    assert B % b_tile == 0
    grid = (B // b_tile,)
    rows_q, rows_k = b_tile * Sq, b_tile * Sk

    # bf16 activations at the boundary (half the DMA bytes; MXU consumes bf16).
    q2d = q_in.reshape(B * Sq, H).astype(jnp.bfloat16)
    k2d = k_in.reshape(B * Sk, H).astype(jnp.bfloat16)
    v2d = v_in.reshape(B * Sk, H).astype(jnp.bfloat16)
    mask3d = mask.reshape(B, 1, Sk).astype(jnp.float32)   # raw mask; -1e9 applied in-kernel

    # Fold the softmax scale into the Q projection; MXU weights as bf16.
    wq = (params["wq"] * scale).astype(jnp.bfloat16)
    bq = (params["bq"] * scale).reshape(1, H).astype(jnp.float32)
    wk = params["wk"].astype(jnp.bfloat16)
    bk = params["bk"].reshape(1, H).astype(jnp.float32)
    wv = params["wv"].astype(jnp.bfloat16)
    bv = params["bv"].reshape(1, H).astype(jnp.float32)
    wm = params["wm"].astype(jnp.bfloat16)
    bm = params["bm"].reshape(1, H).astype(jnp.float32)

    kernel = functools.partial(_mhatt_kernel, n_head=n_head, d_head=d_head,
                               b_tile=b_tile, sq=Sq, sk=Sk)

    est = _vmem_bytes_estimate(b_tile, Sq, Sk, H)
    vmem_limit = int(min(64 * 1024 * 1024, max(32 * 1024 * 1024, 3 * est // 2)))

    out2d = pl.pallas_call(
        kernel,
        out_shape=jax.ShapeDtypeStruct((B * Sq, H), jnp.float32),
        grid=grid,
        in_specs=[
            pl.BlockSpec((rows_q, H), lambda i: (i, 0)),        # q (flattened rows)
            pl.BlockSpec((rows_k, H), lambda i: (i, 0)),        # k
            pl.BlockSpec((rows_k, H), lambda i: (i, 0)),        # v
            pl.BlockSpec((b_tile, 1, Sk), lambda i: (i, 0, 0)),  # raw mask
            pl.BlockSpec((H, H), lambda i: (0, 0)),             # wq (scaled)
            pl.BlockSpec((1, H), lambda i: (0, 0)),              # bq (scaled)
            pl.BlockSpec((H, H), lambda i: (0, 0)),              # wk
            pl.BlockSpec((1, H), lambda i: (0, 0)),              # bk
            pl.BlockSpec((H, H), lambda i: (0, 0)),              # wv
            pl.BlockSpec((1, H), lambda i: (0, 0)),              # bv
            pl.BlockSpec((H, H), lambda i: (0, 0)),              # wm
            pl.BlockSpec((1, H), lambda i: (0, 0)),              # bm
        ],
        out_specs=pl.BlockSpec((rows_q, H), lambda i: (i, 0)),
        scratch_shapes=[
            pltpu.VMEM((rows_q, H), jnp.float32),   # q projection
            pltpu.VMEM((rows_k, H), jnp.float32),   # k projection
            pltpu.VMEM((rows_k, H), jnp.float32),   # v projection
            pltpu.VMEM((rows_q, H), jnp.float32),   # per-head attention output
        ],
        compiler_params=pltpu.CompilerParams(
            dimension_semantics=("parallel",),
            vmem_limit_bytes=vmem_limit),
    )(q2d, k2d, v2d, mask3d, wq, bq, wk, bk, wv, bv, wm, bm)

    return out2d.reshape(B, Sq, H)


# ----------------------------------------------------------------------------
# Pure-JAX reference (mirrors PyTorch MHAtt.forward in eval mode)
# ----------------------------------------------------------------------------
def mhatt_reference(p, v_in, k_in, q_in, mask, n_head):
    B, Sq, H = q_in.shape
    Sk = k_in.shape[1]
    d = H // n_head

    def lin(x, w, b):   # same bf16-operand / f32-accumulate contract as the kernel
        return jnp.dot(x.astype(jnp.bfloat16), w.astype(jnp.bfloat16),
                       preferred_element_type=jnp.float32) + b

    q = lin(q_in, p["wq"], p["bq"]).reshape(B, Sq, n_head, d).transpose(0, 2, 1, 3)
    k = lin(k_in, p["wk"], p["bk"]).reshape(B, Sk, n_head, d).transpose(0, 2, 1, 3)
    v = lin(v_in, p["wv"], p["bv"]).reshape(B, Sk, n_head, d).transpose(0, 2, 1, 3)
    scores = jnp.einsum("bhqd,bhkd->bhqk", q, k,
                        preferred_element_type=jnp.float32) / math.sqrt(d)
    scores = jnp.where(mask > 0.5, -1.0e9, scores)
    att_map = jax.nn.softmax(scores, axis=-1)
    atted = jnp.einsum("bhqk,bhkd->bhqd", att_map, v,
                       preferred_element_type=jnp.float32)
    atted = atted.transpose(0, 2, 1, 3).reshape(B, Sq, H)
    return lin(atted, p["wm"], p["bm"])


# ----------------------------------------------------------------------------
# Deterministic parameter initialization (mimics nn.Linear defaults)
# ----------------------------------------------------------------------------
def init_linear(key, din, dout):
    k1, k2 = jax.random.split(key)
    bound = 1.0 / math.sqrt(din)
    w = jax.random.uniform(k1, (din, dout), jnp.float32, -bound, bound)
    b = jax.random.uniform(k2, (dout,), jnp.float32, -bound, bound)
    return w, b


def init_mhatt(key, H):
    ks = jax.random.split(key, 4)
    p = {}
    for name, kk in zip(("v", "k", "q", "m"), ks):
        w, b = init_linear(kk, H, H)
        p["w" + name], p["b" + name] = w, b
    return p


# ----------------------------------------------------------------------------
# Main
# ----------------------------------------------------------------------------
if __name__ == "__main__":
    # opt: hidden_size=32, multi_head=4, hidden_size_head=8
    # NOTE: toy shape for correctness only; benchmark at MCAN sizes
    # (H=512, S~100, large B) where the batch-row tiling pays off.
    B, Sq, Sk, H, N_HEAD = 2, 8, 8, 32, 4

    key = jax.random.PRNGKey(0)
    kx, ky, kp = jax.random.split(key, 3)

    x = jax.random.normal(kx, (B, Sq, H), jnp.float32)   # queries
    y = jax.random.normal(ky, (B, Sk, H), jnp.float32)   # keys / values

    # mask: 1.0 at padded key positions (mimics the torch bool mask)
    y_lens = jnp.array([Sk, Sk - 3])
    y_mask = (jnp.arange(Sk)[None, :] >= y_lens[:, None]).astype(jnp.float32)
    y_mask = y_mask.reshape(B, 1, 1, Sk)

    params = init_mhatt(kp, H)

    out = mhatt_pallas(params, y, y, x, y_mask, N_HEAD)   # forward(v, k, q, mask)
    jax.block_until_ready(out)

    ref = mhatt_reference(params, y, y, x, y_mask, N_HEAD)
    err = float(jnp.max(jnp.abs(out - ref)))

    assert out.shape == (B, Sq, H)
    assert bool(jnp.all(jnp.isfinite(out)))
    assert err < 3e-2, f"max abs err vs reference: {err}"
    print("KERNEL_OK")
</pallas_src>

<mosaic_0001>
module attributes {stable_mosaic.version = 11 : i64} {
  func.func @_mhatt_kernel(%arg0: i32, %arg1: memref<8x32xbf16, #tpu.memory_space<vmem>>, %arg2: memref<8x32xbf16, #tpu.memory_space<vmem>>, %arg3: memref<8x32xbf16, #tpu.memory_space<vmem>>, %arg4: memref<1x1x8xf32, #tpu.memory_space<vmem>>, %arg5: memref<32x32xbf16, #tpu.memory_space<vmem>>, %arg6: memref<1x32xf32, #tpu.memory_space<vmem>>, %arg7: memref<32x32xbf16, #tpu.memory_space<vmem>>, %arg8: memref<1x32xf32, #tpu.memory_space<vmem>>, %arg9: memref<32x32xbf16, #tpu.memory_space<vmem>>, %arg10: memref<1x32xf32, #tpu.memory_space<vmem>>, %arg11: memref<32x32xbf16, #tpu.memory_space<vmem>>, %arg12: memref<1x32xf32, #tpu.memory_space<vmem>>, %arg13: memref<8x32xf32, #tpu.memory_space<vmem>>, %arg14: memref<8x32xf32, #tpu.memory_space<vmem>>, %arg15: memref<8x32xf32, #tpu.memory_space<vmem>>, %arg16: memref<8x32xf32, #tpu.memory_space<vmem>>, %arg17: memref<8x32xf32, #tpu.memory_space<vmem>>) attributes {dimension_semantics = [#tpu.dimension_semantics<parallel>], iteration_bounds = array<i64: 2>, scalar_prefetch = 0 : i64, scratch_operands = 4 : i64, tpu.core_type = #tpu.core_type<tc>, window_params = [{transform_indices = @transform_0, window_bounds = array<i64: 8, 32>}, {transform_indices = @transform_1, window_bounds = array<i64: 8, 32>}, {transform_indices = @transform_2, window_bounds = array<i64: 8, 32>}, {transform_indices = @transform_3, window_bounds = array<i64: 1, 1, 8>}, {pipeline_mode = #tpu.pipeline_mode<synchronous>, transform_indices = @transform_4, window_bounds = array<i64: 32, 32>}, {pipeline_mode = #tpu.pipeline_mode<synchronous>, transform_indices = @transform_5, window_bounds = array<i64: 1, 32>}, {pipeline_mode = #tpu.pipeline_mode<synchronous>, transform_indices = @transform_6, window_bounds = array<i64: 32, 32>}, {pipeline_mode = #tpu.pipeline_mode<synchronous>, transform_indices = @transform_7, window_bounds = array<i64: 1, 32>}, {pipeline_mode = #tpu.pipeline_mode<synchronous>, transform_indices = @transform_8, window_bounds = array<i64: 32, 32>}, {pipeline_mode = #tpu.pipeline_mode<synchronous>, transform_indices = @transform_9, window_bounds = array<i64: 1, 32>}, {pipeline_mode = #tpu.pipeline_mode<synchronous>, transform_indices = @transform_10, window_bounds = array<i64: 32, 32>}, {pipeline_mode = #tpu.pipeline_mode<synchronous>, transform_indices = @transform_11, window_bounds = array<i64: 1, 32>}, {transform_indices = @transform_12, window_bounds = array<i64: 8, 32>}]} {
    %c0 = arith.constant 0 : index
    %c0_0 = arith.constant 0 : index
    %0 = vector.load %arg1[%c0, %c0_0] : memref<8x32xbf16, #tpu.memory_space<vmem>>, vector<8x32xbf16>
    %c0_1 = arith.constant 0 : index
    %c0_2 = arith.constant 0 : index
    %1 = vector.load %arg5[%c0_1, %c0_2] : memref<32x32xbf16, #tpu.memory_space<vmem>>, vector<32x32xbf16>
    %cst = arith.constant dense<0.000000e+00> : vector<8x32xf32>
    %2 = tpu.matmul %0, %1, %cst {dimension_numbers = #tpu.dot_dimension_numbers<[1], [0], [0], [1], [0, 0, 1, 1], [], []>} : vector<8x32xbf16>, vector<32x32xbf16>, vector<8x32xf32> -> vector<8x32xf32>
    %c0_3 = arith.constant 0 : index
    %c0_4 = arith.constant 0 : index
    %3 = vector.load %arg6[%c0_3, %c0_4] : memref<1x32xf32, #tpu.memory_space<vmem>>, vector<1x32xf32>
    %4 = vector.broadcast %3 : vector<1x32xf32> to vector<8x32xf32>
    %5 = arith.addf %2, %4 : vector<8x32xf32>
    %c0_5 = arith.constant 0 : index
    %c0_6 = arith.constant 0 : index
    %6 = vector.load %arg14[%c0_5, %c0_6] : memref<8x32xf32, #tpu.memory_space<vmem>>, vector<8x32xf32>
    tpu.vector_store %arg14[%c0_5, %c0_6], %5 {strides = array<i32>} : memref<8x32xf32, #tpu.memory_space<vmem>>, vector<8x32xf32>,
    %c0_7 = arith.constant 0 : index
    %c0_8 = arith.constant 0 : index
    %7 = vector.load %arg2[%c0_7, %c0_8] : memref<8x32xbf16, #tpu.memory_space<vmem>>, vector<8x32xbf16>
    %c0_9 = arith.constant 0 : index
    %c0_10 = arith.constant 0 : index
    %8 = vector.load %arg7[%c0_9, %c0_10] : memref<32x32xbf16, #tpu.memory_space<vmem>>, vector<32x32xbf16>
    %cst_11 = arith.constant dense<0.000000e+00> : vector<8x32xf32>
    %9 = tpu.matmul %7, %8, %cst_11 {dimension_numbers = #tpu.dot_dimension_numbers<[1], [0], [0], [1], [0, 0, 1, 1], [], []>} : vector<8x32xbf16>, vector<32x32xbf16>, vector<8x32xf32> -> vector<8x32xf32>
    %c0_12 = arith.constant 0 : index
    %c0_13 = arith.constant 0 : index
    %10 = vector.load %arg8[%c0_12, %c0_13] : memref<1x32xf32, #tpu.memory_space<vmem>>, vector<1x32xf32>
    %11 = vector.broadcast %10 : vector<1x32xf32> to vector<8x32xf32>
    %12 = arith.addf %9, %11 : vector<8x32xf32>
    %c0_14 = arith.constant 0 : index
    %c0_15 = arith.constant 0 : index
    %13 = vector.load %arg15[%c0_14, %c0_15] : memref<8x32xf32, #tpu.memory_space<vmem>>, vector<8x32xf32>
    tpu.vector_store %arg15[%c0_14, %c0_15], %12 {strides = array<i32>} : memref<8x32xf32, #tpu.memory_space<vmem>>, vector<8x32xf32>,
    %c0_16 = arith.constant 0 : index
    %c0_17 = arith.constant 0 : index
    %14 = vector.load %arg3[%c0_16, %c0_17] : memref<8x32xbf16, #tpu.memory_space<vmem>>, vector<8x32xbf16>
    %c0_18 = arith.constant 0 : index
    %c0_19 = arith.constant 0 : index
    %15 = vector.load %arg9[%c0_18, %c0_19] : memref<32x32xbf16, #tpu.memory_space<vmem>>, vector<32x32xbf16>
    %cst_20 = arith.constant dense<0.000000e+00> : vector<8x32xf32>
    %16 = tpu.matmul %14, %15, %cst_20 {dimension_numbers = #tpu.dot_dimension_numbers<[1], [0], [0], [1], [0, 0, 1, 1], [], []>} : vector<8x32xbf16>, vector<32x32xbf16>, vector<8x32xf32> -> vector<8x32xf32>
    %c0_21 = arith.constant 0 : index
    %c0_22 = arith.constant 0 : index
    %17 = vector.load %arg10[%c0_21, %c0_22] : memref<1x32xf32, #tpu.memory_space<vmem>>, vector<1x32xf32>
    %18 = vector.broadcast %17 : vector<1x32xf32> to vector<8x32xf32>
    %19 = arith.addf %16, %18 : vector<8x32xf32>
    %c0_23 = arith.constant 0 : index
    %c0_24 = arith.constant 0 : index
    %20 = vector.load %arg16[%c0_23, %c0_24] : memref<8x32xf32, #tpu.memory_space<vmem>>, vector<8x32xf32>
    tpu.vector_store %arg16[%c0_23, %c0_24], %19 {strides = array<i32>} : memref<8x32xf32, #tpu.memory_space<vmem>>, vector<8x32xf32>,
    %cst_25 = arith.constant -1.000000e+09 : f32
    %c0_i32 = arith.constant 0 : i32
    %c8_i32 = arith.constant 8 : i32
    %21 = arith.muli %c0_i32, %c8_i32 : i32
    %22 = tpu.assume_multiple %21, 8 : i32
    %c8_i32_26 = arith.constant 8 : i32
    %23 = arith.muli %c0_i32, %c8_i32_26 : i32
    %24 = tpu.assume_multiple %23, 8 : i32
    %25 = arith.index_cast %c0_i32 : i32 to index
    %c0_27 = arith.constant 0 : index
    %c0_28 = arith.constant 0 : index
    %26 = vector.load %arg4[%25, %c0_27, %c0_28] : memref<1x1x8xf32, #tpu.memory_space<vmem>>, vector<1x1x8xf32>
    %27 = vector.shape_cast %26 : vector<1x1x8xf32> to vector<1x8xf32>
    %cst_29 = arith.constant 5.000000e-01 : f32
    %28 = vector.broadcast %cst_29 : f32 to vector<1x8xf32>
    %29 = arith.cmpf ogt, %27, %28 : vector<1x8xf32>
    %30 = vector.shape_cast %29 : vector<1x8xi1> to vector<1x8xi1>
    %31 = vector.broadcast %30 : vector<1x8xi1> to vector<8x8xi1>
    %32 = arith.index_cast %22 : i32 to index
    %c0_30 = arith.constant 0 : index
    %33 = vector.load %arg14[%32, %c0_30] : memref<8x32xf32, #tpu.memory_space<vmem>>, vector<8x8xf32>
    %34 = arith.index_cast %24 : i32 to index
    %c0_31 = arith.constant 0 : index
    %35 = vector.load %arg15[%34, %c0_31] : memref<8x32xf32, #tpu.memory_space<vmem>>, vector<8x8xf32>
    %36 = arith.index_cast %24 : i32 to index
    %c0_32 = arith.constant 0 : index
    %37 = vector.load %arg16[%36, %c0_32] : memref<8x32xf32, #tpu.memory_space<vmem>>, vector<8x8xf32>
    %cst_33 = arith.constant dense<0.000000e+00> : vector<8x8xf32>
    %38 = tpu.matmul %33, %35, %cst_33 {dimension_numbers = #tpu.dot_dimension_numbers<[1], [1], [0], [0], [0, 0, 1, 0], [], []>} : vector<8x8xf32>, vector<8x8xf32>, vector<8x8xf32> -> vector<8x8xf32>
    %39 = vector.broadcast %cst_25 : f32 to vector<8x8xf32>
    %40 = arith.select %31, %39, %38 : vector<8x8xi1>, vector<8x8xf32>
    %cst_34 = arith.constant dense<0xFF800000> : vector<8xf32>
    %41 = vector.multi_reduction <maximumf>, %40, %cst_34 [1] : vector<8x8xf32> to vector<8xf32>
    %42 = vector.shape_cast %41 : vector<8xf32> to vector<8x1xf32>
    %43 = vector.broadcast %42 : vector<8x1xf32> to vector<8x8xf32>
    %44 = arith.subf %40, %43 : vector<8x8xf32>
    %45 = math.exp %44 : vector<8x8xf32>
    %cst_35 = arith.constant dense<0.000000e+00> : vector<8xf32>
    %46 = vector.multi_reduction <add>, %45, %cst_35 [1] : vector<8x8xf32> to vector<8xf32>
    %47 = vector.shape_cast %46 : vector<8xf32> to vector<8x1xf32>
    %48 = tpu.reciprocal %47 {approx = true} : vector<8x1xf32> -> vector<8x1xf32>
    %49 = vector.broadcast %48 : vector<8x1xf32> to vector<8x8xf32>
    %50 = arith.mulf %45, %49 : vector<8x8xf32>
    %cst_36 = arith.constant dense<0.000000e+00> : vector<8x8xf32>
    %51 = tpu.matmul %50, %37, %cst_36 {dimension_numbers = #tpu.dot_dimension_numbers<[1], [0], [0], [1], [0, 0, 1, 1], [], []>} : vector<8x8xf32>, vector<8x8xf32>, vector<8x8xf32> -> vector<8x8xf32>
    %52 = arith.index_cast %22 : i32 to index
    %c0_37 = arith.constant 0 : index
    %53 = vector.load %arg17[%52, %c0_37] : memref<8x32xf32, #tpu.memory_space<vmem>>, vector<8x8xf32>
    tpu.vector_store %arg17[%52, %c0_37], %51 {strides = array<i32>} : memref<8x32xf32, #tpu.memory_space<vmem>>, vector<8x8xf32>,
    %54 = arith.index_cast %22 : i32 to index
    %c8 = arith.constant 8 : index
    %55 = vector.load %arg14[%54, %c8] : memref<8x32xf32, #tpu.memory_space<vmem>>, vector<8x8xf32>
    %56 = arith.index_cast %24 : i32 to index
    %c8_38 = arith.constant 8 : index
    %57 = vector.load %arg15[%56, %c8_38] : memref<8x32xf32, #tpu.memory_space<vmem>>, vector<8x8xf32>
    %58 = arith.index_cast %24 : i32 to index
    %c8_39 = arith.constant 8 : index
    %59 = vector.load %arg16[%58, %c8_39] : memref<8x32xf32, #tpu.memory_space<vmem>>, vector<8x8xf32>
    %cst_40 = arith.constant dense<0.000000e+00> : vector<8x8xf32>
    %60 = tpu.matmul %55, %57, %cst_40 {dimension_numbers = #tpu.dot_dimension_numbers<[1], [1], [0], [0], [0, 0, 1, 0], [], []>} : vector<8x8xf32>, vector<8x8xf32>, vector<8x8xf32> -> vector<8x8xf32>
    %61 = vector.broadcast %cst_25 : f32 to vector<8x8xf32>
    %62 = arith.select %31, %61, %60 : vector<8x8xi1>, vector<8x8xf32>
    %cst_41 = arith.constant dense<0xFF800000> : vector<8xf32>
    %63 = vector.multi_reduction <maximumf>, %62, %cst_41 [1] : vector<8x8xf32> to vector<8xf32>
    %64 = vector.shape_cast %63 : vector<8xf32> to vector<8x1xf32>
    %65 = vector.broadcast %64 : vector<8x1xf32> to vector<8x8xf32>
    %66 = arith.subf %62, %65 : vector<8x8xf32>
    %67 = math.exp %66 : vector<8x8xf32>
    %cst_42 = arith.constant dense<0.000000e+00> : vector<8xf32>
    %68 = vector.multi_reduction <add>, %67, %cst_42 [1] : vector<8x8xf32> to vector<8xf32>
    %69 = vector.shape_cast %68 : vector<8xf32> to vector<8x1xf32>
    %70 = tpu.reciprocal %69 {approx = true} : vector<8x1xf32> -> vector<8x1xf32>
    %71 = vector.broadcast %70 : vector<8x1xf32> to vector<8x8xf32>
    %72 = arith.mulf %67, %71 : vector<8x8xf32>
    %cst_43 = arith.constant dense<0.000000e+00> : vector<8x8xf32>
    %73 = tpu.matmul %72, %59, %cst_43 {dimension_numbers = #tpu.dot_dimension_numbers<[1], [0], [0], [1], [0, 0, 1, 1], [], []>} : vector<8x8xf32>, vector<8x8xf32>, vector<8x8xf32> -> vector<8x8xf32>
    %74 = arith.index_cast %22 : i32 to index
    %c8_44 = arith.constant 8 : index
    %75 = vector.load %arg17[%74, %c8_44] : memref<8x32xf32, #tpu.memory_space<vmem>>, vector<8x8xf32>
    tpu.vector_store %arg17[%74, %c8_44], %73 {strides = array<i32>} : memref<8x32xf32, #tpu.memory_space<vmem>>, vector<8x8xf32>,
    %76 = arith.index_cast %22 : i32 to index
    %c16 = arith.constant 16 : index
    %77 = vector.load %arg14[%76, %c16] : memref<8x32xf32, #tpu.memory_space<vmem>>, vector<8x8xf32>
    %78 = arith.index_cast %24 : i32 to index
    %c16_45 = arith.constant 16 : index
    %79 = vector.load %arg15[%78, %c16_45] : memref<8x32xf32, #tpu.memory_space<vmem>>, vector<8x8xf32>
    %80 = arith.index_cast %24 : i32 to index
    %c16_46 = arith.constant 16 : index
    %81 = vector.load %arg16[%80, %c16_46] : memref<8x32xf32, #tpu.memory_space<vmem>>, vector<8x8xf32>
    %cst_47 = arith.constant dense<0.000000e+00> : vector<8x8xf32>
    %82 = tpu.matmul %77, %79, %cst_47 {dimension_numbers = #tpu.dot_dimension_numbers<[1], [1], [0], [0], [0, 0, 1, 0], [], []>} : vector<8x8xf32>, vector<8x8xf32>, vector<8x8xf32> -> vector<8x8xf32>
    %83 = vector.broadcast %cst_25 : f32 to vector<8x8xf32>
    %84 = arith.select %31, %83, %82 : vector<8x8xi1>, vector<8x8xf32>
    %cst_48 = arith.constant dense<0xFF800000> : vector<8xf32>
    %85 = vector.multi_reduction <maximumf>, %84, %cst_48 [1] : vector<8x8xf32> to vector<8xf32>
    %86 = vector.shape_cast %85 : vector<8xf32> to vector<8x1xf32>
    %87 = vector.broadcast %86 : vector<8x1xf32> to vector<8x8xf32>
    %88 = arith.subf %84, %87 : vector<8x8xf32>
    %89 = math.exp %88 : vector<8x8xf32>
    %cst_49 = arith.constant dense<0.000000e+00> : vector<8xf32>
    %90 = vector.multi_reduction <add>, %89, %cst_49 [1] : vector<8x8xf32> to vector<8xf32>
    %91 = vector.shape_cast %90 : vector<8xf32> to vector<8x1xf32>
    %92 = tpu.reciprocal %91 {approx = true} : vector<8x1xf32> -> vector<8x1xf32>
    %93 = vector.broadcast %92 : vector<8x1xf32> to vector<8x8xf32>
    %94 = arith.mulf %89, %93 : vector<8x8xf32>
    %cst_50 = arith.constant dense<0.000000e+00> : vector<8x8xf32>
    %95 = tpu.matmul %94, %81, %cst_50 {dimension_numbers = #tpu.dot_dimension_numbers<[1], [0], [0], [1], [0, 0, 1, 1], [], []>} : vector<8x8xf32>, vector<8x8xf32>, vector<8x8xf32> -> vector<8x8xf32>
    %96 = arith.index_cast %22 : i32 to index
    %c16_51 = arith.constant 16 : index
    %97 = vector.load %arg17[%96, %c16_51] : memref<8x32xf32, #tpu.memory_space<vmem>>, vector<8x8xf32>
    tpu.vector_store %arg17[%96, %c16_51], %95 {strides = array<i32>} : memref<8x32xf32, #tpu.memory_space<vmem>>, vector<8x8xf32>,
    %98 = arith.index_cast %22 : i32 to index
    %c24 = arith.constant 24 : index
    %99 = vector.load %arg14[%98, %c24] : memref<8x32xf32, #tpu.memory_space<vmem>>, vector<8x8xf32>
    %100 = arith.index_cast %24 : i32 to index
    %c24_52 = arith.constant 24 : index
    %101 = vector.load %arg15[%100, %c24_52] : memref<8x32xf32, #tpu.memory_space<vmem>>, vector<8x8xf32>
    %102 = arith.index_cast %24 : i32 to index
    %c24_53 = arith.constant 24 : index
    %103 = vector.load %arg16[%102, %c24_53] : memref<8x32xf32, #tpu.memory_space<vmem>>, vector<8x8xf32>
    %cst_54 = arith.constant dense<0.000000e+00> : vector<8x8xf32>
    %104 = tpu.matmul %99, %101, %cst_54 {dimension_numbers = #tpu.dot_dimension_numbers<[1], [1], [0], [0], [0, 0, 1, 0], [], []>} : vector<8x8xf32>, vector<8x8xf32>, vector<8x8xf32> -> vector<8x8xf32>
    %105 = vector.broadcast %cst_25 : f32 to vector<8x8xf32>
    %106 = arith.select %31, %105, %104 : vector<8x8xi1>, vector<8x8xf32>
    %cst_55 = arith.constant dense<0xFF800000> : vector<8xf32>
    %107 = vector.multi_reduction <maximumf>, %106, %cst_55 [1] : vector<8x8xf32> to vector<8xf32>
    %108 = vector.shape_cast %107 : vector<8xf32> to vector<8x1xf32>
    %109 = vector.broadcast %108 : vector<8x1xf32> to vector<8x8xf32>
    %110 = arith.subf %106, %109 : vector<8x8xf32>
    %111 = math.exp %110 : vector<8x8xf32>
    %cst_56 = arith.constant dense<0.000000e+00> : vector<8xf32>
    %112 = vector.multi_reduction <add>, %111, %cst_56 [1] : vector<8x8xf32> to vector<8xf32>
    %113 = vector.shape_cast %112 : vector<8xf32> to vector<8x1xf32>
    %114 = tpu.reciprocal %113 {approx = true} : vector<8x1xf32> -> vector<8x1xf32>
    %115 = vector.broadcast %114 : vector<8x1xf32> to vector<8x8xf32>
    %116 = arith.mulf %111, %115 : vector<8x8xf32>
    %cst_57 = arith.constant dense<0.000000e+00> : vector<8x8xf32>
    %117 = tpu.matmul %116, %103, %cst_57 {dimension_numbers = #tpu.dot_dimension_numbers<[1], [0], [0], [1], [0, 0, 1, 1], [], []>} : vector<8x8xf32>, vector<8x8xf32>, vector<8x8xf32> -> vector<8x8xf32>
    %118 = arith.index_cast %22 : i32 to index
    %c24_58 = arith.constant 24 : index
    %119 = vector.load %arg17[%118, %c24_58] : memref<8x32xf32, #tpu.memory_space<vmem>>, vector<8x8xf32>
    tpu.vector_store %arg17[%118, %c24_58], %117 {strides = array<i32>} : memref<8x32xf32, #tpu.memory_space<vmem>>, vector<8x8xf32>,
    %c1_i32 = arith.constant 1 : i32
    %c0_59 = arith.constant 0 : index
    %c0_60 = arith.constant 0 : index
    %120 = vector.load %arg17[%c0_59, %c0_60] : memref<8x32xf32, #tpu.memory_space<vmem>>, vector<8x32xf32>
    %121 = arith.truncf %120 : vector<8x32xf32> to vector<8x32xbf16>
    %c0_61 = arith.constant 0 : index
    %c0_62 = arith.constant 0 : index
    %122 = vector.load %arg11[%c0_61, %c0_62] : memref<32x32xbf16, #tpu.memory_space<vmem>>, vector<32x32xbf16>
    %cst_63 = arith.constant dense<0.000000e+00> : vector<8x32xf32>
    %123 = tpu.matmul %121, %122, %cst_63 {dimension_numbers = #tpu.dot_dimension_numbers<[1], [0], [0], [1], [0, 0, 1, 1], [], []>} : vector<8x32xbf16>, vector<32x32xbf16>, vector<8x32xf32> -> vector<8x32xf32>
    %c0_64 = arith.constant 0 : index
    %c0_65 = arith.constant 0 : index
    %124 = vector.load %arg12[%c0_64, %c0_65] : memref<1x32xf32, #tpu.memory_space<vmem>>, vector<1x32xf32>
    %125 = vector.broadcast %124 : vector<1x32xf32> to vector<8x32xf32>
    %126 = arith.addf %123, %125 : vector<8x32xf32>
    %c0_66 = arith.constant 0 : index
    %c0_67 = arith.constant 0 : index
    %127 = vector.load %arg13[%c0_66, %c0_67] : memref<8x32xf32, #tpu.memory_space<vmem>>, vector<8x32xf32>
    tpu.vector_store %arg13[%c0_66, %c0_67], %126 {strides = array<i32>} : memref<8x32xf32, #tpu.memory_space<vmem>>, vector<8x32xf32>,
    return
  }
  func.func @transform_0(%arg0: i32) -> (i32, i32) {
    %c0_i32 = arith.constant 0 : i32
    %c0_i32_0 = arith.constant 0 : i32
    return %arg0, %c0_i32 : i32, i32
  }
  func.func @transform_1(%arg0: i32) -> (i32, i32) {
    %c0_i32 = arith.constant 0 : i32
    %c0_i32_0 = arith.constant 0 : i32
    return %arg0, %c0_i32 : i32, i32
  }
  func.func @transform_2(%arg0: i32) -> (i32, i32) {
    %c0_i32 = arith.constant 0 : i32
    %c0_i32_0 = arith.constant 0 : i32
    return %arg0, %c0_i32 : i32, i32
  }
  func.func @transform_3(%arg0: i32) -> (i32, i32, i32) {
    %c0_i32 = arith.constant 0 : i32
    %c0_i32_0 = arith.constant 0 : i32
    %c0_i32_1 = arith.constant 0 : i32
    return %arg0, %c0_i32, %c0_i32_0 : i32, i32, i32
  }
  func.func @transform_4(%arg0: i32) -> (i32, i32) {
    %c0_i32 = arith.constant 0 : i32
    %c0_i32_0 = arith.constant 0 : i32
    %c0_i32_1 = arith.constant 0 : i32
    return %c0_i32, %c0_i32_0 : i32, i32
  }
  func.func @transform_5(%arg0: i32) -> (i32, i32) {
    %c0_i32 = arith.constant 0 : i32
    %c0_i32_0 = arith.constant 0 : i32
    %c0_i32_1 = arith.constant 0 : i32
    return %c0_i32, %c0_i32_0 : i32, i32
  }
  func.func @transform_6(%arg0: i32) -> (i32, i32) {
    %c0_i32 = arith.constant 0 : i32
    %c0_i32_0 = arith.constant 0 : i32
    %c0_i32_1 = arith.constant 0 : i32
    return %c0_i32, %c0_i32_0 : i32, i32
  }
  func.func @transform_7(%arg0: i32) -> (i32, i32) {
    %c0_i32 = arith.constant 0 : i32
    %c0_i32_0 = arith.constant 0 : i32
    %c0_i32_1 = arith.constant 0 : i32
    return %c0_i32, %c0_i32_0 : i32, i32
  }
  func.func @transform_8(%arg0: i32) -> (i32, i32) {
    %c0_i32 = arith.constant 0 : i32
    %c0_i32_0 = arith.constant 0 : i32
    %c0_i32_1 = arith.constant 0 : i32
    return %c0_i32, %c0_i32_0 : i32, i32
  }
  func.func @transform_9(%arg0: i32) -> (i32, i32) {
    %c0_i32 = arith.constant 0 : i32
    %c0_i32_0 = arith.constant 0 : i32
    %c0_i32_1 = arith.constant 0 : i32
    return %c0_i32, %c0_i32_0 : i32, i32
  }
  func.func @transform_10(%arg0: i32) -> (i32, i32) {
    %c0_i32 = arith.constant 0 : i32
    %c0_i32_0 = arith.constant 0 : i32
    %c0_i32_1 = arith.constant 0 : i32
    return %c0_i32, %c0_i32_0 : i32, i32
  }
  func.func @transform_11(%arg0: i32) -> (i32, i32) {
    %c0_i32 = arith.constant 0 : i32
    %c0_i32_0 = arith.constant 0 : i32
    %c0_i32_1 = arith.constant 0 : i32
    return %c0_i32, %c0_i32_0 : i32, i32
  }
  func.func @transform_12(%arg0: i32) -> (i32, i32) {
    %c0_i32 = arith.constant 0 : i32
    %c0_i32_0 = arith.constant 0 : i32
    return %arg0, %c0_i32 : i32, i32
  }
}

</mosaic_0001>

<llo_original>
// kernel: tpu_custom_call.1
$region0: #{tpu_custom_call.1}
  #allocation0 [shape = 'u32[]', space=smem, size = 0x4, offset = 0x4, fixed_abs, tag = 'smem constant byte address 0x4 - core index']
  #allocation1 [shape = 'u32[144,128]{1,0:T(1,128)}', space=vmem, size = 0x12000, scoped, tag = 'internal scratch']
  #allocation2 [shape = 'f32[8,32]{1,0:T(8,128)}', space=vmem, size = 0x1000, scoped, tag = 'scratch operand']
  #allocation3 [shape = 'f32[8,32]{1,0:T(8,128)}', space=vmem, size = 0x1000, scoped, tag = 'scratch operand']
  #allocation4 [shape = 'f32[8,32]{1,0:T(8,128)}', space=vmem, size = 0x1000, scoped, tag = 'scratch operand']
  #allocation5 [shape = 'f32[8,32]{1,0:T(8,128)}', space=vmem, size = 0x1000, scoped, tag = 'scratch operand']
  %s0 = inlined_call_operand.hbm [shape: bf16[16,32], index: 0, kind: input, shape index: {}]
  %s1 = inlined_call_operand.hbm [shape: bf16[16,32], index: 1, kind: input, shape index: {}]
  %s2 = inlined_call_operand.hbm [shape: bf16[16,32], index: 2, kind: input, shape index: {}]
  %s3 = inlined_call_operand.vmem [shape: f32[2,1,8], index: 3, kind: input, shape index: {}]
  %s4 = inlined_call_operand.hbm [shape: bf16[32,32], index: 4, kind: input, shape index: {}]
  %s5 = inlined_call_operand.hbm [shape: f32[1,32], index: 5, kind: input, shape index: {}]
  %s6 = inlined_call_operand.vmem [shape: bf16[32,32], index: 6, kind: input, shape index: {}]
  %s7 = inlined_call_operand.hbm [shape: f32[1,32], index: 7, kind: input, shape index: {}]
  %s8 = inlined_call_operand.hbm [shape: bf16[32,32], index: 8, kind: input, shape index: {}]
  %s9 = inlined_call_operand.hbm [shape: f32[1,32], index: 9, kind: input, shape index: {}]
  %s10 = inlined_call_operand.vmem [shape: bf16[32,32], index: 10, kind: input, shape index: {}]
  %s11 = inlined_call_operand.vmem [shape: f32[1,32], index: 11, kind: input, shape index: {}]
  %s12 = inlined_call_operand.hbm [shape: f32[16,32], index: 12, kind: output, shape index: {}]
  %s13 = sld [smem:[#allocation0]]
  $region113: #{tpu_custom_call.1} parent=0
    _
  %s15 = ssub.s32 1, %s13
  %s16 = scalar_select 0, %s15, %s13
  $region1: #{tpu_custom_call.1} parent=0
    #allocation6 [shape = 'u8[4096]{0}', space=vmem, size = 0x1000, scoped, tag = 'input window, operand 0']
    #allocation7 [shape = 's32[2]{0}', space=sflag, size = 0x8, scoped, tag = 'scoped memory for tpu_custom_call.1']
    #allocation8 [shape = 's32[2]{0}', space=sflag, size = 0x8, scoped, tag = 'scoped memory for tpu_custom_call.1']
    #allocation9 [shape = 'u8[4096]{0}', space=vmem, size = 0x1000, scoped, tag = 'input window, operand 1']
    #allocation10 [shape = 's32[2]{0}', space=sflag, size = 0x8, scoped, tag = 'scoped memory for tpu_custom_call.1']
    #allocation11 [shape = 'u8[4096]{0}', space=vmem, size = 0x1000, scoped, tag = 'input window, operand 2']
    #allocation12 [shape = 'u8[8192]{0}', space=vmem, size = 0x2000, scoped, tag = 'input window, operand 4, single buffered']
    #allocation13 [shape = 's32[1]{0}', space=sflag, size = 0x4, scoped, tag = 'scoped memory for tpu_custom_call.1']
    #allocation14 [shape = 'u8[512]{0}', space=vmem, size = 0x400, scoped, tag = 'input window, operand 5, single buffered']
    #allocation15 [shape = 'u8[512]{0}', space=vmem, size = 0x400, scoped, tag = 'input window, operand 7, single buffered']
    #allocation16 [shape = 's32[1]{0}', space=sflag, size = 0x4, scoped, tag = 'scoped memory for tpu_custom_call.1']
    #allocation17 [shape = 'u8[8192]{0}', space=vmem, size = 0x2000, scoped, tag = 'input window, operand 8, single buffered']
    #allocation18 [shape = 'u8[512]{0}', space=vmem, size = 0x400, scoped, tag = 'input window, operand 9, single buffered']
    #allocation19 [shape = 's32[1]{0}', space=sflag, size = 0x4, scoped, tag = 'scoped memory for tpu_custom_call.1']
    #allocation20 [shape = 'u8[8192]{0}', space=vmem, size = 0x2000, scoped, tag = 'output window, operand 0']
    %17 = vsyncpa [#allocation7], 0
    %s18 = scalar_lea.sflag [#allocation7], 1
    %19 = vsyncpa %s18, 0
    %20 = vsyncpa [#allocation10], 0
    %s21 = scalar_lea.sflag [#allocation10], 1
    %22 = vsyncpa %s21, 0
    %23 = vsyncpa [#allocation13], 0
    %24 = vsyncpa [#allocation16], 0
    %25 = vsyncpa [#allocation19], 0
    %26 = vsyncpa [#allocation8], 0
    %s27 = scalar_lea.sflag [#allocation8], 1
    %28 = vsyncpa %s27, 0
    loop: start=0, step=1, limit=4
    $region2: #{tpu_custom_call.1} parent=1 // loop_pre_header
      _
    $region3: #{tpu_custom_call.1} parent=1 // loop_header
      %s30 = sphi 0, %s34
      %p31 = scmp.ge.s32.totalorder %s30, 4
      %s40 = sphi 0, %s42
      %s43 = sphi 0, %s40
      %s44 = sphi 0, %s43
      %s60 = sphi 0, %s44
      %s66 = sphi 0, %s68
      %s69 = sphi 0, %s66
      %s70 = sphi 0, %s69
      %s86 = sphi 0, %s70
      %s92 = sphi 0, %s94
      %s95 = sphi 0, %s92
      %s96 = sphi 0, %s95
      %s112 = sphi 0, %s96
      %s118 = sphi 0, %s120
      %s121 = sphi 0, %s118
      %s122 = sphi 0, %s121
      %s138 = sphi 0, %s122
      %s142 = sphi 0, %s142
      %s144 = sphi 0, %s142
      %s145 = sphi 0, %s144
      %s159 = sphi 0, %s145
      %s163 = sphi 0, %s163
      %s165 = sphi 0, %s163
      %s166 = sphi 0, %s165
      %s180 = sphi 0, %s166
      %s184 = sphi 0, %s184
      %s186 = sphi 0, %s184
      %s187 = sphi 0, %s186
      %s201 = sphi 0, %s187
      %s205 = sphi 0, %s205
      %s207 = sphi 0, %s205
      %s208 = sphi 0, %s207
      %s222 = sphi 0, %s208
      %s226 = sphi 0, %s226
      %s228 = sphi 0, %s226
      %s229 = sphi 0, %s228
      %s243 = sphi 0, %s229
      %s247 = sphi 0, %s247
      %s249 = sphi 0, %s247
      %s250 = sphi 0, %s249
      %s264 = sphi 0, %s250
      %s268 = sphi 0, %s268
      %s270 = sphi 0, %s268
      %s271 = sphi 0, %s270
      %s285 = sphi 0, %s271
      %s289 = sphi 0, %s289
      %s291 = sphi 0, %s289
      %s292 = sphi 0, %s291
      %s306 = sphi 0, %s292
      %s312 = sphi 0, %s314
      %s315 = sphi 0, %s312
      %s316 = sphi 0, %s315
      %s332 = sphi 0, %s316
    $region4: #{tpu_custom_call.1} parent=1 // loop_header_branch
      %33 = sbr.rel (%p31) target = $region8
    $region5: #{tpu_custom_call.1} parent=1 // loop_body
      %s35 = ssub.s32 %s30, 1
      %s36 = ssub.s32 %s30, 2
      %s37 = sadd.s32 %s30, 1
      %s38 = ssub.s32 %s30, %s37
      %p39 = scmp.eq.s32.totalorder %s38, 0
      %s41 = sadd.s32 %s40, 1
      %s42 = scalar_select %p39, %s40, %s41
      %p45 = pneg %p39
      %p46 = scmp.eq.s32.totalorder %s30, 1
      %p47 = por %p45, %p46
      %p48 = scmp.ne.s32.totalorder %s40, %s43
      %p49 = scmp.eq.s32.totalorder %s30, 0
      %p50 = por %p48, %p49
      %p51 = scmp.ne.s32.totalorder %s40, %s43
      %p52 = scmp.eq.s32.totalorder %s35, 1
      %p53 = por %p51, %p52
      %p54 = scmp.ne.s32.totalorder %s43, %s44
      %p55 = scmp.eq.s32.totalorder %s35, 0
      %p56 = por %p54, %p55
      %p57 = scmp.ne.s32.totalorder %s43, %s44
      %p58 = scmp.eq.s32.totalorder %s36, 1
      %p59 = por %p57, %p58
      %p61 = scmp.ne.s32.totalorder %s44, %s60
      %p62 = scmp.eq.s32.totalorder %s36, 0
      %p63 = por %p61, %p62
      %s64 = ssub.s32 %s30, %s37
      %p65 = scmp.eq.s32.totalorder %s64, 0
      %s67 = sadd.s32 %s66, 1
      %s68 = scalar_select %p65, %s66, %s67
      %p71 = pneg %p65
      %p72 = scmp.eq.s32.totalorder %s30, 1
      %p73 = por %p71, %p72
      %p74 = scmp.ne.s32.totalorder %s66, %s69
      %p75 = scmp.eq.s32.totalorder %s30, 0
      %p76 = por %p74, %p75
      %p77 = scmp.ne.s32.totalorder %s66, %s69
      %p78 = scmp.eq.s32.totalorder %s35, 1
      %p79 = por %p77, %p78
      %p80 = scmp.ne.s32.totalorder %s69, %s70
      %p81 = scmp.eq.s32.totalorder %s35, 0
      %p82 = por %p80, %p81
      %p83 = scmp.ne.s32.totalorder %s69, %s70
      %p84 = scmp.eq.s32.totalorder %s36, 1
      %p85 = por %p83, %p84
      %p87 = scmp.ne.s32.totalorder %s70, %s86
      %p88 = scmp.eq.s32.totalorder %s36, 0
      %p89 = por %p87, %p88
      %s90 = ssub.s32 %s30, %s37
      %p91 = scmp.eq.s32.totalorder %s90, 0
      %s93 = sadd.s32 %s92, 1
      %s94 = scalar_select %p91, %s92, %s93
      %p97 = pneg %p91
      %p98 = scmp.eq.s32.totalorder %s30, 1
      %p99 = por %p97, %p98
      %p100 = scmp.ne.s32.totalorder %s92, %s95
      %p101 = scmp.eq.s32.totalorder %s30, 0
      %p102 = por %p100, %p101
      %p103 = scmp.ne.s32.totalorder %s92, %s95
      %p104 = scmp.eq.s32.totalorder %s35, 1
      %p105 = por %p103, %p104
      %p106 = scmp.ne.s32.totalorder %s95, %s96
      %p107 = scmp.eq.s32.totalorder %s35, 0
      %p108 = por %p106, %p107
      %p109 = scmp.ne.s32.totalorder %s95, %s96
      %p110 = scmp.eq.s32.totalorder %s36, 1
      %p111 = por %p109, %p110
      %p113 = scmp.ne.s32.totalorder %s96, %s112
      %p114 = scmp.eq.s32.totalorder %s36, 0
      %p115 = por %p113, %p114
      %s116 = ssub.s32 %s30, %s37
      %p117 = scmp.eq.s32.totalorder %s116, 0
      %s119 = sadd.s32 %s118, 1
      %s120 = scalar_select %p117, %s118, %s119
      %p123 = pneg %p117
      %p124 = scmp.eq.s32.totalorder %s30, 1
      %p125 = por %p123, %p124
      %p126 = scmp.ne.s32.totalorder %s118, %s121
      %p127 = scmp.eq.s32.totalorder %s30, 0
      %p128 = por %p126, %p127
      %p129 = scmp.ne.s32.totalorder %s118, %s121
      %p130 = scmp.eq.s32.totalorder %s35, 1
      %p131 = por %p129, %p130
      %p132 = scmp.ne.s32.totalorder %s121, %s122
      %p133 = scmp.eq.s32.totalorder %s35, 0
      %p134 = por %p132, %p133
      %p135 = scmp.ne.s32.totalorder %s121, %s122
      %p136 = scmp.eq.s32.totalorder %s36, 1
      %p137 = por %p135, %p136
      %p139 = scmp.ne.s32.totalorder %s122, %s138
      %p140 = scmp.eq.s32.totalorder %s36, 0
      %p141 = por %p139, %p140
      %s143 = sadd.s32 %s142, 1
      %p146 = scmp.eq.s32.totalorder %s30, 1
      %p147 = scmp.ne.s32.totalorder %s142, %s144
      %p148 = scmp.eq.s32.totalorder %s30, 0
      %p149 = por %p147, %p148
      %p150 = scmp.ne.s32.totalorder %s142, %s144
      %p151 = scmp.eq.s32.totalorder %s35, 1
      %p152 = por %p150, %p151
      %p153 = scmp.ne.s32.totalorder %s144, %s145
      %p154 = scmp.eq.s32.totalorder %s35, 0
      %p155 = por %p153, %p154
      %p156 = scmp.ne.s32.totalorder %s144, %s145
      %p157 = scmp.eq.s32.totalorder %s36, 1
      %p158 = por %p156, %p157
      %p160 = scmp.ne.s32.totalorder %s145, %s159
      %p161 = scmp.eq.s32.totalorder %s36, 0
      %p162 = por %p160, %p161
      %s164 = sadd.s32 %s163, 1
      %p167 = scmp.eq.s32.totalorder %s30, 1
      %p168 = scmp.ne.s32.totalorder %s163, %s165
      %p169 = scmp.eq.s32.totalorder %s30, 0
      %p170 = por %p168, %p169
      %p171 = scmp.ne.s32.totalorder %s163, %s165
      %p172 = scmp.eq.s32.totalorder %s35, 1
      %p173 = por %p171, %p172
      %p174 = scmp.ne.s32.totalorder %s165, %s166
      %p175 = scmp.eq.s32.totalorder %s35, 0
      %p176 = por %p174, %p175
      %p177 = scmp.ne.s32.totalorder %s165, %s166
      %p178 = scmp.eq.s32.totalorder %s36, 1
      %p179 = por %p177, %p178
      %p181 = scmp.ne.s32.totalorder %s166, %s180
      %p182 = scmp.eq.s32.totalorder %s36, 0
      %p183 = por %p181, %p182
      %s185 = sadd.s32 %s184, 1
      %p188 = scmp.eq.s32.totalorder %s30, 1
      %p189 = scmp.ne.s32.totalorder %s184, %s186
      %p190 = scmp.eq.s32.totalorder %s30, 0
      %p191 = por %p189, %p190
      %p192 = scmp.ne.s32.totalorder %s184, %s186
      %p193 = scmp.eq.s32.totalorder %s35, 1
      %p194 = por %p192, %p193
      %p195 = scmp.ne.s32.totalorder %s186, %s187
      %p196 = scmp.eq.s32.totalorder %s35, 0
      %p197 = por %p195, %p196
      %p198 = scmp.ne.s32.totalorder %s186, %s187
      %p199 = scmp.eq.s32.totalorder %s36, 1
      %p200 = por %p198, %p199
      %p202 = scmp.ne.s32.totalorder %s187, %s201
      %p203 = scmp.eq.s32.totalorder %s36, 0
      %p204 = por %p202, %p203
      %s206 = sadd.s32 %s205, 1
      %p209 = scmp.eq.s32.totalorder %s30, 1
      %p210 = scmp.ne.s32.totalorder %s205, %s207
      %p211 = scmp.eq.s32.totalorder %s30, 0
      %p212 = por %p210, %p211
      %p213 = scmp.ne.s32.totalorder %s205, %s207
      %p214 = scmp.eq.s32.totalorder %s35, 1
      %p215 = por %p213, %p214
      %p216 = scmp.ne.s32.totalorder %s207, %s208
      %p217 = scmp.eq.s32.totalorder %s35, 0
      %p218 = por %p216, %p217
      %p219 = scmp.ne.s32.totalorder %s207, %s208
      %p220 = scmp.eq.s32.totalorder %s36, 1
      %p221 = por %p219, %p220
      %p223 = scmp.ne.s32.totalorder %s208, %s222
      %p224 = scmp.eq.s32.totalorder %s36, 0
      %p225 = por %p223, %p224
      %s227 = sadd.s32 %s226, 1
      %p230 = scmp.eq.s32.totalorder %s30, 1
      %p231 = scmp.ne.s32.totalorder %s226, %s228
      %p232 = scmp.eq.s32.totalorder %s30, 0
      %p233 = por %p231, %p232
      %p234 = scmp.ne.s32.totalorder %s226, %s228
      %p235 = scmp.eq.s32.totalorder %s35, 1
      %p236 = por %p234, %p235
      %p237 = scmp.ne.s32.totalorder %s228, %s229
      %p238 = scmp.eq.s32.totalorder %s35, 0
      %p239 = por %p237, %p238
      %p240 = scmp.ne.s32.totalorder %s228, %s229
      %p241 = scmp.eq.s32.totalorder %s36, 1
      %p242 = por %p240, %p241
      %p244 = scmp.ne.s32.totalorder %s229, %s243
      %p245 = scmp.eq.s32.totalorder %s36, 0
      %p246 = por %p244, %p245
      %s248 = sadd.s32 %s247, 1
      %p251 = scmp.eq.s32.totalorder %s30, 1
      %p252 = scmp.ne.s32.totalorder %s247, %s249
      %p253 = scmp.eq.s32.totalorder %s30, 0
      %p254 = por %p252, %p253
      %p255 = scmp.ne.s32.totalorder %s247, %s249
      %p256 = scmp.eq.s32.totalorder %s35, 1
      %p257 = por %p255, %p256
      %p258 = scmp.ne.s32.totalorder %s249, %s250
      %p259 = scmp.eq.s32.totalorder %s35, 0
      %p260 = por %p258, %p259
      %p261 = scmp.ne.s32.totalorder %s249, %s250
      %p262 = scmp.eq.s32.totalorder %s36, 1
      %p263 = por %p261, %p262
      %p265 = scmp.ne.s32.totalorder %s250, %s264
      %p266 = scmp.eq.s32.totalorder %s36, 0
      %p267 = por %p265, %p266
      %s269 = sadd.s32 %s268, 1
      %p272 = scmp.eq.s32.totalorder %s30, 1
      %p273 = scmp.ne.s32.totalorder %s268, %s270
      %p274 = scmp.eq.s32.totalorder %s30, 0
      %p275 = por %p273, %p274
      %p276 = scmp.ne.s32.totalorder %s268, %s270
      %p277 = scmp.eq.s32.totalorder %s35, 1
      %p278 = por %p276, %p277
      %p279 = scmp.ne.s32.totalorder %s270, %s271
      %p280 = scmp.eq.s32.totalorder %s35, 0
      %p281 = por %p279, %p280
      %p282 = scmp.ne.s32.totalorder %s270, %s271
      %p283 = scmp.eq.s32.totalorder %s36, 1
      %p284 = por %p282, %p283
      %p286 = scmp.ne.s32.totalorder %s271, %s285
      %p287 = scmp.eq.s32.totalorder %s36, 0
      %p288 = por %p286, %p287
      %s290 = sadd.s32 %s289, 1
      %p293 = scmp.eq.s32.totalorder %s30, 1
      %p294 = scmp.ne.s32.totalorder %s289, %s291
      %p295 = scmp.eq.s32.totalorder %s30, 0
      %p296 = por %p294, %p295
      %p297 = scmp.ne.s32.totalorder %s289, %s291
      %p298 = scmp.eq.s32.totalorder %s35, 1
      %p299 = por %p297, %p298
      %p300 = scmp.ne.s32.totalorder %s291, %s292
      %p301 = scmp.eq.s32.totalorder %s35, 0
      %p302 = por %p300, %p301
      %p303 = scmp.ne.s32.totalorder %s291, %s292
      %p304 = scmp.eq.s32.totalorder %s36, 1
      %p305 = por %p303, %p304
      %p307 = scmp.ne.s32.totalorder %s292, %s306
      %p308 = scmp.eq.s32.totalorder %s36, 0
      %p309 = por %p307, %p308
      %s310 = ssub.s32 %s30, %s37
      %p311 = scmp.eq.s32.totalorder %s310, 0
      %s313 = sadd.s32 %s312, 1
      %s314 = scalar_select %p311, %s312, %s313
      %p317 = pneg %p311
      %p318 = scmp.eq.s32.totalorder %s30, 1
      %p319 = por %p317, %p318
      %p320 = scmp.ne.s32.totalorder %s312, %s315
      %p321 = scmp.eq.s32.totalorder %s30, 0
      %p322 = por %p320, %p321
      %p323 = scmp.ne.s32.totalorder %s312, %s315
      %p324 = scmp.eq.s32.totalorder %s35, 1
      %p325 = por %p323, %p324
      %p326 = scmp.ne.s32.totalorder %s315, %s316
      %p327 = scmp.eq.s32.totalorder %s35, 0
      %p328 = por %p326, %p327
      %p329 = scmp.ne.s32.totalorder %s315, %s316
      %p330 = scmp.eq.s32.totalorder %s36, 1
      %p331 = por %p329, %p330
      %p333 = scmp.ne.s32.totalorder %s316, %s332
      %p334 = scmp.eq.s32.totalorder %s36, 0
      %p335 = por %p333, %p334
      %p336 = scmp.le.s32.totalorder 1, %s30
      %p337 = scmp.lt.s32.totalorder %s30, 3
      %p338 = pnand %p336, %p337
      %p339 = pneg %p338
      // Predicated region
      $region9: #{tpu_custom_call.1} parent=5 // pred_check
        _
      $region10: #{tpu_custom_call.1} parent=5 // pred_check_branch
        %341 = sbr.rel (%p338) target = $region12
      $region11: #{tpu_custom_call.1} parent=5 // pred_region
        %s342 = ssub.s32 %s30, 1
        // Predicated region
        $region13: #{tpu_custom_call.1} parent=11 // pred_check
          %p343 = pneg %p155
        $region14: #{tpu_custom_call.1} parent=11 // pred_check_branch
          %345 = sbr.rel (%p343) target = $region16
        $region15: #{tpu_custom_call.1} parent=11 // pred_region
          %s347 = ssub.s32 256, 256
          %348 = vsyncadd [#allocation13], %s347
          %s349 = sshll.u32 [#allocation12], 4
          %s350 = int_to_ptr.vmem [resolvable:$true] %s349
          %355 = dma.hbm_to_vmem [thread:$0]  %s4, 256, %s350, [#allocation13], 64, 64, 4
        $region16: #{tpu_custom_call.1} parent=11 // pred_fallthru
          _
        // Predicated region
        $region17: #{tpu_custom_call.1} parent=11 // pred_check
          %p356 = pneg %p176
        $region18: #{tpu_custom_call.1} parent=11 // pred_check_branch
          %358 = sbr.rel (%p356) target = $region20
        $region19: #{tpu_custom_call.1} parent=11 // pred_region
          %s360 = ssub.s32 16, 16
          %361 = vsyncadd [#allocation13], %s360
          %s363 = sshll.u32 [#allocation14], 4
          %s364 = int_to_ptr.vmem [resolvable:$true] %s363
          %366 = dma.hbm_to_vmem [thread:$0]  %s5, 16, %s364, [#allocation13]
        $region20: #{tpu_custom_call.1} parent=11 // pred_fallthru
          _
        // Predicated region
        $region21: #{tpu_custom_call.1} parent=11 // pred_check
          %p367 = pneg %p197
        $region22: #{tpu_custom_call.1} parent=11 // pred_check_branch
          %369 = sbr.rel (%p367) target = $region24
        $region23: #{tpu_custom_call.1} parent=11 // pred_region
          _
        $region24: #{tpu_custom_call.1} parent=11 // pred_fallthru
          _
        // Predicated region
        $region25: #{tpu_custom_call.1} parent=11 // pred_check
          %p370 = pneg %p218
        $region26: #{tpu_custom_call.1} parent=11 // pred_check_branch
          %372 = sbr.rel (%p370) target = $region28
        $region27: #{tpu_custom_call.1} parent=11 // pred_region
          %s374 = ssub.s32 16, 16
          %375 = vsyncadd [#allocation16], %s374
          %s377 = sshll.u32 [#allocation15], 4
          %s378 = int_to_ptr.vmem [resolvable:$true] %s377
          %380 = dma.hbm_to_vmem [thread:$0]  %s7, 16, %s378, [#allocation16]
        $region28: #{tpu_custom_call.1} parent=11 // pred_fallthru
          _
        // Predicated region
        $region29: #{tpu_custom_call.1} parent=11 // pred_check
          %p381 = pneg %p239
        $region30: #{tpu_custom_call.1} parent=11 // pred_check_branch
          %383 = sbr.rel (%p381) target = $region32
        $region31: #{tpu_custom_call.1} parent=11 // pred_region
          %s385 = ssub.s32 256, 256
          %386 = vsyncadd [#allocation16], %s385
          %s387 = sshll.u32 [#allocation17], 4
          %s388 = int_to_ptr.vmem [resolvable:$true] %s387
          %393 = dma.hbm_to_vmem [thread:$0]  %s8, 256, %s388, [#allocation16], 64, 64, 4
        $region32: #{tpu_custom_call.1} parent=11 // pred_fallthru
          _
        // Predicated region
        $region33: #{tpu_custom_call.1} parent=11 // pred_check
          %p394 = pneg %p260
        $region34: #{tpu_custom_call.1} parent=11 // pred_check_branch
          %396 = sbr.rel (%p394) target = $region36
        $region35: #{tpu_custom_call.1} parent=11 // pred_region
          %s398 = ssub.s32 16, 16
          %399 = vsyncadd [#allocation19], %s398
          %s401 = sshll.u32 [#allocation18], 4
          %s402 = int_to_ptr.vmem [resolvable:$true] %s401
          %404 = dma.hbm_to_vmem [thread:$0]  %s9, 16, %s402, [#allocation19]
        $region36: #{tpu_custom_call.1} parent=11 // pred_fallthru
          _
        // Predicated region
        $region37: #{tpu_custom_call.1} parent=11 // pred_check
          %p405 = pneg %p281
        $region38: #{tpu_custom_call.1} parent=11 // pred_check_branch
          %407 = sbr.rel (%p405) target = $region40
        $region39: #{tpu_custom_call.1} parent=11 // pred_region
          _
        $region40: #{tpu_custom_call.1} parent=11 // pred_fallthru
          _
        // Predicated region
        $region41: #{tpu_custom_call.1} parent=11 // pred_check
          %p408 = pneg %p302
        $region42: #{tpu_custom_call.1} parent=11 // pred_check_branch
          %410 = sbr.rel (%p408) target = $region44
        $region43: #{tpu_custom_call.1} parent=11 // pred_region
          _
        $region44: #{tpu_custom_call.1} parent=11 // pred_fallthru
          _
      $region12: #{tpu_custom_call.1} parent=5 // pred_fallthru
        _
      %p411 = scmp.lt.s32.totalorder %s30, 2
      // Predicated region
      $region45: #{tpu_custom_call.1} parent=5 // pred_check
        %p412 = pneg %p411
      $region46: #{tpu_custom_call.1} parent=5 // pred_check_branch
        %414 = sbr.rel (%p412) target = $region48
      $region47: #{tpu_custom_call.1} parent=5 // pred_region
        // Predicated region
        $region49: #{tpu_custom_call.1} parent=47 // pred_check
          %p415 = pneg %p50
        $region50: #{tpu_custom_call.1} parent=47 // pred_check_branch
          %417 = sbr.rel (%p415) target = $region52
        $region51: #{tpu_custom_call.1} parent=47 // pred_region
          %s418 = sand.u32 %s40, 1
          %s419 = scalar_lea.sflag [#allocation7], %s418
          %s420 = sand.u32 %s40, 1
          %s421 = smul.addr %s420, 4
          %s422 = scalar_lea.vmem [#allocation6], %s421
          %s424 = ssub.s32 64, 64
          %425 = vsyncadd %s419, %s424
          %s426 = smul.addr %s30, 64
          %s427 = scalar_lea.hbm %s0, %s426
          %s429 = sshll.u32 %s422, 4
          %s430 = int_to_ptr.vmem [resolvable:$true] %s429
          %432 = dma.hbm_to_vmem [thread:$0]  %s427, 64, %s430, %s419
        $region52: #{tpu_custom_call.1} parent=47 // pred_fallthru
          _
        // Predicated region
        $region53: #{tpu_custom_call.1} parent=47 // pred_check
          %p433 = pneg %p76
        $region54: #{tpu_custom_call.1} parent=47 // pred_check_branch
          %435 = sbr.rel (%p433) target = $region56
        $region55: #{tpu_custom_call.1} parent=47 // pred_region
          %s436 = sand.u32 %s30, 1
          %s437 = scalar_lea.sflag [#allocation10], %s436
          %s438 = sand.u32 %s66, 1
          %s439 = smul.addr %s438, 4
          %s440 = scalar_lea.vmem [#allocation9], %s439
          %s442 = ssub.s32 64, 64
          %443 = vsyncadd %s437, %s442
          %s444 = smul.addr %s30, 64
          %s445 = scalar_lea.hbm %s1, %s444
          %s447 = sshll.u32 %s440, 4
          %s448 = int_to_ptr.vmem [resolvable:$true] %s447
          %450 = dma.hbm_to_vmem [thread:$0]  %s445, 64, %s448, %s437
        $region56: #{tpu_custom_call.1} parent=47 // pred_fallthru
          _
        // Predicated region
        $region57: #{tpu_custom_call.1} parent=47 // pred_check
          %p451 = pneg %p102
        $region58: #{tpu_custom_call.1} parent=47 // pred_check_branch
          %453 = sbr.rel (%p451) target = $region60
        $region59: #{tpu_custom_call.1} parent=47 // pred_region
          %s454 = sand.u32 %s30, 1
          %s455 = scalar_lea.sflag [#allocation10], %s454
          %s456 = sand.u32 %s92, 1
          %s457 = smul.addr %s456, 4
          %s458 = scalar_lea.vmem [#allocation11], %s457
          %s460 = ssub.s32 64, 64
          %461 = vsyncadd %s455, %s460
          %s462 = smul.addr %s30, 64
          %s463 = scalar_lea.hbm %s2, %s462
          %s465 = sshll.u32 %s458, 4
          %s466 = int_to_ptr.vmem [resolvable:$true] %s465
          %468 = dma.hbm_to_vmem [thread:$0]  %s463, 64, %s466, %s455
        $region60: #{tpu_custom_call.1} parent=47 // pred_fallthru
          _
        // Predicated region
        $region61: #{tpu_custom_call.1} parent=47 // pred_check
          %p469 = pneg %p128
        $region62: #{tpu_custom_call.1} parent=47 // pred_check_branch
          %471 = sbr.rel (%p469) target = $region64
        $region63: #{tpu_custom_call.1} parent=47 // pred_region
          %p472 = scmp.lt.s32.totalorder %s30, 1
          %s473 = scalar_select %p472, %s30, 1
          %s474 = scalar_lea.vmem %s3, %s473
        $region64: #{tpu_custom_call.1} parent=47 // pred_fallthru
          _
      $region48: #{tpu_custom_call.1} parent=5 // pred_fallthru
        _
      %p475 = scmp.le.s32.totalorder 1, %s30
      %p476 = scmp.lt.s32.totalorder %s30, 3
      %p477 = pnand %p475, %p476
      %p478 = pneg %p477
      // Predicated region
      $region65: #{tpu_custom_call.1} parent=5 // pred_check
        _
      $region66: #{tpu_custom_call.1} parent=5 // pred_check_branch
        %480 = sbr.rel (%p477) target = $region68
      $region67: #{tpu_custom_call.1} parent=5 // pred_region
        %s481 = ssub.s32 %s30, 1
        %s482 = sand.u32 %s43, 1
        %s483 = scalar_lea.sflag [#allocation7], %s482
        %s484 = sand.u32 %s43, 1
        %s485 = smul.addr %s484, 4
        %s486 = scalar_lea.vmem [#allocation6], %s485
        // Predicated region
        $region69: #{tpu_custom_call.1} parent=67 // pred_check
          %p487 = pneg %p56
        $region70: #{tpu_custom_call.1} parent=67 // pred_check_branch
          %489 = sbr.rel (%p487) target = $region72
        $region71: #{tpu_custom_call.1} parent=67 // pred_region
          %490 = dma.done %s483, 64
        $region72: #{tpu_custom_call.1} parent=67 // pred_fallthru
          _
        %s491 = sand.u32 %s35, 1
        %s492 = scalar_lea.sflag [#allocation10], %s491
        %s493 = sand.u32 %s69, 1
        %s494 = smul.addr %s493, 4
        %s495 = scalar_lea.vmem [#allocation9], %s494
        // Predicated region
        $region73: #{tpu_custom_call.1} parent=67 // pred_check
          %p496 = pneg %p82
        $region74: #{tpu_custom_call.1} parent=67 // pred_check_branch
          %498 = sbr.rel (%p496) target = $region76
        $region75: #{tpu_custom_call.1} parent=67 // pred_region
          %499 = dma.done %s492, 64
        $region76: #{tpu_custom_call.1} parent=67 // pred_fallthru
          _
        %s500 = sand.u32 %s35, 1
        %s501 = scalar_lea.sflag [#allocation10], %s500
        %s502 = sand.u32 %s95, 1
        %s503 = smul.addr %s502, 4
        %s504 = scalar_lea.vmem [#allocation11], %s503
        // Predicated region
        $region77: #{tpu_custom_call.1} parent=67 // pred_check
          %p505 = pneg %p108
        $region78: #{tpu_custom_call.1} parent=67 // pred_check_branch
          %507 = sbr.rel (%p505) target = $region80
        $region79: #{tpu_custom_call.1} parent=67 // pred_region
          %508 = dma.done %s501, 64
        $region80: #{tpu_custom_call.1} parent=67 // pred_fallthru
          _
        // Predicated region
        $region81: #{tpu_custom_call.1} parent=67 // pred_check
          %p509 = pneg %p155
        $region82: #{tpu_custom_call.1} parent=67 // pred_check_branch
          %511 = sbr.rel (%p509) target = $region84
        $region83: #{tpu_custom_call.1} parent=67 // pred_region
          %512 = dma.done [#allocation13], 256
        $region84: #{tpu_custom_call.1} parent=67 // pred_fallthru
          _
        // Predicated region
        $region85: #{tpu_custom_call.1} parent=67 // pred_check
          %p513 = pneg %p176
        $region86: #{tpu_custom_call.1} parent=67 // pred_check_branch
          %515 = sbr.rel (%p513) target = $region88
        $region87: #{tpu_custom_call.1} parent=67 // pred_region
          %516 = dma.done [#allocation13], 16
        $region88: #{tpu_custom_call.1} parent=67 // pred_fallthru
          _
        // Predicated region
        $region89: #{tpu_custom_call.1} parent=67 // pred_check
          %p517 = pneg %p218
        $region90: #{tpu_custom_call.1} parent=67 // pred_check_branch
          %519 = sbr.rel (%p517) target = $region92
        $region91: #{tpu_custom_call.1} parent=67 // pred_region
          %520 = dma.done [#allocation16], 16
        $region92: #{tpu_custom_call.1} parent=67 // pred_fallthru
          _
        // Predicated region
        $region93: #{tpu_custom_call.1} parent=67 // pred_check
          %p521 = pneg %p239
        $region94: #{tpu_custom_call.1} parent=67 // pred_check_branch
          %523 = sbr.rel (%p521) target = $region96
        $region95: #{tpu_custom_call.1} parent=67 // pred_region
          %524 = dma.done [#allocation16], 256
        $region96: #{tpu_custom_call.1} parent=67 // pred_fallthru
          _
        // Predicated region
        $region97: #{tpu_custom_call.1} parent=67 // pred_check
          %p525 = pneg %p260
        $region98: #{tpu_custom_call.1} parent=67 // pred_check_branch
          %527 = sbr.rel (%p525) target = $region100
        $region99: #{tpu_custom_call.1} parent=67 // pred_region
          %528 = dma.done [#allocation19], 16
        $region100: #{tpu_custom_call.1} parent=67 // pred_fallthru
          _
        %s529 = sand.u32 %s43, 1
        %s530 = scalar_lea.sflag [#allocation7], %s529
        %s531 = sand.u32 %s43, 1
        %s532 = smul.addr %s531, 4
        %s533 = scalar_lea.vmem [#allocation6], %s532
        %p534 = pneg %p56
        %p535 = pneg %p53
        %s536 = sand.u32 %s35, 1
        %s537 = scalar_lea.sflag [#allocation10], %s536
        %s538 = sand.u32 %s69, 1
        %s539 = smul.addr %s538, 4
        %s540 = scalar_lea.vmem [#allocation9], %s539
        %p541 = pneg %p82
        %p542 = pneg %p79
        %s543 = sand.u32 %s35, 1
        %s544 = scalar_lea.sflag [#allocation10], %s543
        %s545 = sand.u32 %s95, 1
        %s546 = smul.addr %s545, 4
        %s547 = scalar_lea.vmem [#allocation11], %s546
        %p548 = pneg %p108
        %p549 = pneg %p105
        %p550 = scmp.lt.s32.totalorder %s35, 1
        %s551 = scalar_select %p550, %s35, 1
        %s552 = scalar_lea.vmem %s3, %s551
        %p553 = pneg %p134
        %p554 = pneg %p131
        %p555 = pneg %p155
        %p556 = pneg %p152
        %p557 = pneg %p176
        %p558 = pneg %p173
        %p559 = pneg %p197
        %p560 = pneg %p194
        %p561 = pneg %p218
        %p562 = pneg %p215
        %p563 = pneg %p239
        %p564 = pneg %p236
        %p565 = pneg %p260
        %p566 = pneg %p257
        %p567 = pneg %p281
        %p568 = pneg %p278
        %p569 = pneg %p302
        %p570 = pneg %p299
        %p571 = pneg %p328
        %p572 = pneg %p325
        %s573 = sand.u32 %s315, 1
        %s574 = scalar_lea.sflag [#allocation8], %s573
        %s575 = sand.u32 %s315, 1
        %s576 = smul.addr %s575, 8
        %s577 = scalar_lea.vmem [#allocation20], %s576
        %p578 = scmp.lt.s32.totalorder %s35, 1
        %s579 = scalar_select %p578, %s35, 1
        %s580 = scalar_lea.vmem %s3, %s579
        %v582 = vld [vmem:[%s486] sm:$0xf]
        %v583 = vld [vmem:[#allocation12] sm:$0xf]
        %v584 = vld [vmem:[#allocation12 + $0x4] sm:$0xf]
        %v585 = vld [vmem:[#allocation12 + $0x8] sm:$0xf]
        %v586 = vld [vmem:[#allocation12 + $0xc] sm:$0xf]
        %v587 = vld [vmem:[#allocation14] sm:$0x1]
        %v589 = vlaneseq
        %v590 = vshrl.u32 %v589, 7
        %v591 = vsub.s32 0, %v590
        %v592 = vrot.slane %v587, %v591
        %v598 = vunpack.c.l.b16 %v583
        %v599 = vunpack.c.l.b16 %v584
        %v600 = vunpack.c.l.b16 %v585
        %v601 = vunpack.c.l.b16 %v586
        %v602 = vpack.c.b16 %v599, %v598
        %v603 = vpack.c.b16 %v601, %v600
        %vm606 = vcmask 261120
        %v608 = vsel %vm606, %v582, 0
        %610 = vmatprep.subr.bf16.mxu0 0
        %611 = vmatpush1.bf16.msra.mxu0 %v602
        %612 = vmatprep.subr.bf16.mxu0 0
        %613 = vmatpush1.bf16.msra.mxu0 %v603
        %614 = vmatprep.subr.bf16.mxu0 0
        %615 = vmatpush1.bf16.msra.mxu0 0
        %616 = vmatprep.subr.bf16.mxu0 0
        %617 = vmatpush1.bf16.msra.mxu0 0
        %618 = vmatprep.subr.bf16.mxu0 0
        %619 = vmatpush1.bf16.msra.mxu0 0
        %620 = vmatprep.subr.bf16.mxu0 0
        %621 = vmatpush1.bf16.msra.mxu0 0
        %622 = vmatprep.subr.bf16.mxu0 0
        %623 = vmatpush1.bf16.msra.mxu0 0
        %624 = vmatprep.subr.bf16.mxu0 0
        %625 = vmatpush1.bf16.msra.mxu0 0
        %626 = vmatprep.subr.bf16.mxu0 0
        %627 = vmatpush1.bf16.msra.mxu0 0
        %628 = vmatprep.subr.bf16.mxu0 0
        %629 = vmatpush1.bf16.msra.mxu0 0
        %630 = vmatprep.subr.bf16.mxu0 0
        %631 = vmatpush1.bf16.msra.mxu0 0
        %632 = vmatprep.subr.bf16.mxu0 0
        %633 = vmatpush1.bf16.msra.mxu0 0
        %634 = vmatprep.subr.bf16.mxu0 0
        %635 = vmatpush1.bf16.msra.mxu0 0
        %636 = vmatprep.subr.bf16.mxu0 0
        %637 = vmatpush1.bf16.msra.mxu0 0
        %638 = vmatprep.subr.bf16.mxu0 0
        %639 = vmatpush1.bf16.msra.mxu0 0
        %640 = vmatprep.subr.bf16.mxu0 0
        %641 = vmatpush1.bf16.msra.mxu0 0
        %642 = vmatprep.mubr.bf16.mxu0 0
        %643 = vmatmul.mubr.bf16.gmra.mrb[0].mxu0 %v608
        %v644 = vpop.f32.mrb[0].mxu0
        %v645 = vadd.f32 %v592, %v644
        %v646 = vpop.f32.mrb[0].mxu0
        %v647 = vpop.f32.mrb[0].mxu0
        %v648 = vpop.f32.mrb[0].mxu0
        %649 = vdwg.mxu0
        %650 = vst.msk [vmem:[#allocation2] sm:$0xff] %vm606, %v645
        %v651 = vld [vmem:[%s495] sm:$0xf]
        %v652 = vld [vmem:[%s6] sm:$0xf]
        %v653 = vld [vmem:[%s6 + $0x4] sm:$0xf]
        %v654 = vld [vmem:[%s6 + $0x8] sm:$0xf]
        %v655 = vld [vmem:[%s6 + $0xc] sm:$0xf]
        %v656 = vld [vmem:[#allocation15] sm:$0x1]
        %v658 = vlaneseq
        %v659 = vshrl.u32 %v658, 7
        %v660 = vsub.s32 0, %v659
        %v661 = vrot.slane %v656, %v660
        %v667 = vunpack.c.l.b16 %v652
        %v668 = vunpack.c.l.b16 %v653
        %v669 = vunpack.c.l.b16 %v654
        %v670 = vunpack.c.l.b16 %v655
        %v671 = vpack.c.b16 %v668, %v667
        %v672 = vpack.c.b16 %v670, %v669
        %v676 = vsel %vm606, %v651, 0
        %678 = vmatprep.subr.bf16.mxu0 0
        %679 = vmatpush1.bf16.msra.mxu0 %v671
        %680 = vmatprep.subr.bf16.mxu0 0
        %681 = vmatpush1.bf16.msra.mxu0 %v672
        %682 = vmatprep.subr.bf16.mxu0 0
        %683 = vmatpush1.bf16.msra.mxu0 0
        %684 = vmatprep.subr.bf16.mxu0 0
        %685 = vmatpush1.bf16.msra.mxu0 0
        %686 = vmatprep.subr.bf16.mxu0 0
        %687 = vmatpush1.bf16.msra.mxu0 0
        %688 = vmatprep.subr.bf16.mxu0 0
        %689 = vmatpush1.bf16.msra.mxu0 0
        %690 = vmatprep.subr.bf16.mxu0 0
        %691 = vmatpush1.bf16.msra.mxu0 0
        %692 = vmatprep.subr.bf16.mxu0 0
        %693 = vmatpush1.bf16.msra.mxu0 0
        %694 = vmatprep.subr.bf16.mxu0 0
        %695 = vmatpush1.bf16.msra.mxu0 0
        %696 = vmatprep.subr.bf16.mxu0 0
        %697 = vmatpush1.bf16.msra.mxu0 0
        %698 = vmatprep.subr.bf16.mxu0 0
        %699 = vmatpush1.bf16.msra.mxu0 0
        %700 = vmatprep.subr.bf16.mxu0 0
        %701 = vmatpush1.bf16.msra.mxu0 0
        %702 = vmatprep.subr.bf16.mxu0 0
        %703 = vmatpush1.bf16.msra.mxu0 0
        %704 = vmatprep.subr.bf16.mxu0 0
        %705 = vmatpush1.bf16.msra.mxu0 0
        %706 = vmatprep.subr.bf16.mxu0 0
        %707 = vmatpush1.bf16.msra.mxu0 0
        %708 = vmatprep.subr.bf16.mxu0 0
        %709 = vmatpush1.bf16.msra.mxu0 0
        %710 = vmatprep.mubr.bf16.mxu0 0
        %711 = vmatmul.mubr.bf16.gmra.mrb[0].mxu0 %v676
        %v712 = vpop.f32.mrb[0].mxu0
        %v713 = vadd.f32 %v661, %v712
        %v714 = vpop.f32.mrb[0].mxu0
        %v715 = vpop.f32.mrb[0].mxu0
        %v716 = vpop.f32.mrb[0].mxu0
        %717 = vdwg.mxu0
        %718 = vst.msk [vmem:[#allocation3] sm:$0xff] %vm606, %v713
        %v719 = vld [vmem:[%s504] sm:$0xf]
        %v720 = vld [vmem:[#allocation17] sm:$0xf]
        %v721 = vld [vmem:[#allocation17 + $0x4] sm:$0xf]
        %v722 = vld [vmem:[#allocation17 + $0x8] sm:$0xf]
        %v723 = vld [vmem:[#allocation17 + $0xc] sm:$0xf]
        %v724 = vld [vmem:[#allocation18] sm:$0x1]
        %v726 = vlaneseq
        %v727 = vshrl.u32 %v726, 7
        %v728 = vsub.s32 0, %v727
        %v729 = vrot.slane %v724, %v728
        %v735 = vunpack.c.l.b16 %v720
        %v736 = vunpack.c.l.b16 %v721
        %v737 = vunpack.c.l.b16 %v722
        %v738 = vunpack.c.l.b16 %v723
        %v739 = vpack.c.b16 %v736, %v735
        %v740 = vpack.c.b16 %v738, %v737
        %v744 = vsel %vm606, %v719, 0
        %746 = vmatprep.subr.bf16.mxu0 0
        %747 = vmatpush1.bf16.msra.mxu0 %v739
        %748 = vmatprep.subr.bf16.mxu0 0
        %749 = vmatpush1.bf16.msra.mxu0 %v740
        %750 = vmatprep.subr.bf16.mxu0 0
        %751 = vmatpush1.bf16.msra.mxu0 0
        %752 = vmatprep.subr.bf16.mxu0 0
        %753 = vmatpush1.bf16.msra.mxu0 0
        %754 = vmatprep.subr.bf16.mxu0 0
        %755 = vmatpush1.bf16.msra.mxu0 0
        %756 = vmatprep.subr.bf16.mxu0 0
        %757 = vmatpush1.bf16.msra.mxu0 0
        %758 = vmatprep.subr.bf16.mxu0 0
        %759 = vmatpush1.bf16.msra.mxu0 0
        %760 = vmatprep.subr.bf16.mxu0 0
        %761 = vmatpush1.bf16.msra.mxu0 0
        %762 = vmatprep.subr.bf16.mxu0 0
        %763 = vmatpush1.bf16.msra.mxu0 0
        %764 = vmatprep.subr.bf16.mxu0 0
        %765 = vmatpush1.bf16.msra.mxu0 0
        %766 = vmatprep.subr.bf16.mxu0 0
        %767 = vmatpush1.bf16.msra.mxu0 0
        %768 = vmatprep.subr.bf16.mxu0 0
        %769 = vmatpush1.bf16.msra.mxu0 0
        %770 = vmatprep.subr.bf16.mxu0 0
        %771 = vmatpush1.bf16.msra.mxu0 0
        %772 = vmatprep.subr.bf16.mxu0 0
        %773 = vmatpush1.bf16.msra.mxu0 0
        %774 = vmatprep.subr.bf16.mxu0 0
        %775 = vmatpush1.bf16.msra.mxu0 0
        %776 = vmatprep.subr.bf16.mxu0 0
        %777 = vmatpush1.bf16.msra.mxu0 0
        %778 = vmatprep.mubr.bf16.mxu0 0
        %779 = vmatmul.mubr.bf16.gmra.mrb[0].mxu0 %v744
        %v780 = vpop.f32.mrb[0].mxu0
        %v781 = vadd.f32 %v729, %v780
        %v782 = vpop.f32.mrb[0].mxu0
        %v783 = vpop.f32.mrb[0].mxu0
        %v784 = vpop.f32.mrb[0].mxu0
        %785 = vdwg.mxu0
        %786 = vst.msk [vmem:[#allocation4] sm:$0xff] %vm606, %v781
        %v787 = vld [vmem:[%s580] sm:$0x1]
        %vm788 = vcmp.gt.f32.partialorder %v787, 0.5
        %v789 = vsel %vm788, 1, 0
        %v790 = vlaneseq
        %v791 = vshrl.u32 %v790, 7
        %v792 = vsub.s32 0, %v791
        %v793 = vrot.slane %v789, %v792
        %vm794 = vcmp.eq.s32.totalorder %v793, 1
        %v795 = vld [vmem:[#allocation2] sm:$0xff]
        %v796 = vld [vmem:[#allocation3] sm:$0xff]
        %v797 = vld [vmem:[#allocation4] sm:$0xff]
        %vm798 = vcmask 64512
        %v800 = vsel %vm798, %v795, 0
        %v803 = vsel %vm798, %v796, 0
        %805 = vmatprep.subr.mxu0 0.0
        %806 = vmatpush1.xpose.msra.mxu0 %v803
        %807 = vmatprep.subr.mxu0 0.0
        %808 = vmatpush1.xpose.msra.mxu0 0.0
        %809 = vmatprep.subr.mxu0 0.0
        %810 = vmatpush1.xpose.msra.mxu0 0.0
        %811 = vmatprep.subr.mxu0 0.0
        %812 = vmatpush1.xpose.msra.mxu0 0.0
        %813 = vmatprep.subr.mxu0 0.0
        %814 = vmatpush1.xpose.msra.mxu0 0.0
        %815 = vmatprep.subr.mxu0 0.0
        %816 = vmatpush1.xpose.msra.mxu0 0.0
        %817 = vmatprep.subr.mxu0 0.0
        %818 = vmatpush1.xpose.msra.mxu0 0.0
        %819 = vmatprep.subr.mxu0 0.0
        %820 = vmatpush1.xpose.msra.mxu0 0.0
        %821 = vmatprep.subr.mxu0 0.0
        %822 = vmatpush1.xpose.msra.mxu0 0.0
        %823 = vmatprep.subr.mxu0 0.0
        %824 = vmatpush1.xpose.msra.mxu0 0.0
        %825 = vmatprep.subr.mxu0 0.0
        %826 = vmatpush1.xpose.msra.mxu0 0.0
        %827 = vmatprep.subr.mxu0 0.0
        %828 = vmatpush1.xpose.msra.mxu0 0.0
        %829 = vmatprep.subr.mxu0 0.0
        %830 = vmatpush1.xpose.msra.mxu0 0.0
        %831 = vmatprep.subr.mxu0 0.0
        %832 = vmatpush1.xpose.msra.mxu0 0.0
        %833 = vmatprep.subr.mxu0 0.0
        %834 = vmatpush1.xpose.msra.mxu0 0.0
        %835 = vmatprep.subr.mxu0 0.0
        %836 = vmatpush1.xpose.msra.mxu0 0.0
        %837 = vmatprep.subr.mxu0 0.0
        %838 = vmatpush1.xpose.msra.mxu0 0.0
        %839 = vmatprep.subr.mxu0 0.0
        %840 = vmatpush1.xpose.msra.mxu0 0.0
        %841 = vmatprep.subr.mxu0 0.0
        %842 = vmatpush1.xpose.msra.mxu0 0.0
        %843 = vmatprep.subr.mxu0 0.0
        %844 = vmatpush1.xpose.msra.mxu0 0.0
        %845 = vmatprep.subr.mxu0 0.0
        %846 = vmatpush1.xpose.msra.mxu0 0.0
        %847 = vmatprep.subr.mxu0 0.0
        %848 = vmatpush1.xpose.msra.mxu0 0.0
        %849 = vmatprep.subr.mxu0 0.0
        %850 = vmatpush1.xpose.msra.mxu0 0.0
        %851 = vmatprep.subr.mxu0 0.0
        %852 = vmatpush1.xpose.msra.mxu0 0.0
        %853 = vmatprep.subr.mxu0 0.0
        %854 = vmatpush1.xpose.msra.mxu0 0.0
        %855 = vmatprep.subr.mxu0 0.0
        %856 = vmatpush1.xpose.msra.mxu0 0.0
        %857 = vmatprep.subr.mxu0 0.0
        %858 = vmatpush1.xpose.msra.mxu0 0.0
        %859 = vmatprep.subr.mxu0 0.0
        %860 = vmatpush1.xpose.msra.mxu0 0.0
        %861 = vmatprep.subr.mxu0 0.0
        %862 = vmatpush1.xpose.msra.mxu0 0.0
        %863 = vmatprep.subr.mxu0 0.0
        %864 = vmatpush1.xpose.msra.mxu0 0.0
        %865 = vmatprep.subr.mxu0 0.0
        %866 = vmatpush1.xpose.msra.mxu0 0.0
        %867 = vmatprep.subr.mxu0 0.0
        %868 = vmatpush1.xpose.msra.mxu0 0.0
        %869 = vmatprep.mubr.f32.mxu0 0.0
        %870 = vmatmul.mubr.f32.gmra.mrb[0].mxu0 %v800
        %v871 = vpop.f32.mrb[0].mxu0
        %v872 = vadd.f32 0.0, %v871
        %v873 = vpop.f32.mrb[0].mxu0
        %874 = vdwg.mxu0
        %v875 = vsel %vm794, -1e+09, %v872
        %v876 = vsel %vm798, %v875, -inf
        %877 = vmax.xlane.f32.xlu0 %v876
        %v878 = vpop.xlane.xlu0 %877
        %v879 = vsub.f32 %v875, %v878
        %v880 = vmul.f32 %v879, 1.442695
        %v881 = vpow.pop %v880
        %v882 = vsel %vm798, %v881, 0.0
        %883 = vadd.xlane.f32.xlu0 %v882
        %v884 = vpop.xlane.xlu0 %883
        %v885 = vrcp.pop %v884
        %v886 = vmul.f32 %v881, %v885
        %v888 = vsel %vm798, %v886, 0
        %890 = vmatprep.subr.mxu0 0.0
        %891 = vmatpush1.msra.mxu0 %v797
        %892 = vmatprep.subr.mxu0 0.0
        %893 = vmatpush1.msra.mxu0 0.0
        %894 = vmatprep.subr.mxu0 0.0
        %895 = vmatpush1.msra.mxu0 0.0
        %896 = vmatprep.subr.mxu0 0.0
        %897 = vmatpush1.msra.mxu0 0.0
        %898 = vmatprep.subr.mxu0 0.0
        %899 = vmatpush1.msra.mxu0 0.0
        %900 = vmatprep.subr.mxu0 0.0
        %901 = vmatpush1.msra.mxu0 0.0
        %902 = vmatprep.subr.mxu0 0.0
        %903 = vmatpush1.msra.mxu0 0.0
        %904 = vmatprep.subr.mxu0 0.0
        %905 = vmatpush1.msra.mxu0 0.0
        %906 = vmatprep.subr.mxu0 0.0
        %907 = vmatpush1.msra.mxu0 0.0
        %908 = vmatprep.subr.mxu0 0.0
        %909 = vmatpush1.msra.mxu0 0.0
        %910 = vmatprep.subr.mxu0 0.0
        %911 = vmatpush1.msra.mxu0 0.0
        %912 = vmatprep.subr.mxu0 0.0
        %913 = vmatpush1.msra.mxu0 0.0
        %914 = vmatprep.subr.mxu0 0.0
        %915 = vmatpush1.msra.mxu0 0.0
        %916 = vmatprep.subr.mxu0 0.0
        %917 = vmatpush1.msra.mxu0 0.0
        %918 = vmatprep.subr.mxu0 0.0
        %919 = vmatpush1.msra.mxu0 0.0
        %920 = vmatprep.subr.mxu0 0.0
        %921 = vmatpush1.msra.mxu0 0.0
        %922 = vmatprep.subr.mxu0 0.0
        %923 = vmatpush1.msra.mxu0 0.0
        %924 = vmatprep.subr.mxu0 0.0
        %925 = vmatpush1.msra.mxu0 0.0
        %926 = vmatprep.subr.mxu0 0.0
        %927 = vmatpush1.msra.mxu0 0.0
        %928 = vmatprep.subr.mxu0 0.0
        %929 = vmatpush1.msra.mxu0 0.0
        %930 = vmatprep.subr.mxu0 0.0
        %931 = vmatpush1.msra.mxu0 0.0
        %932 = vmatprep.subr.mxu0 0.0
        %933 = vmatpush1.msra.mxu0 0.0
        %934 = vmatprep.subr.mxu0 0.0
        %935 = vmatpush1.msra.mxu0 0.0
        %936 = vmatprep.subr.mxu0 0.0
        %937 = vmatpush1.msra.mxu0 0.0
        %938 = vmatprep.subr.mxu0 0.0
        %939 = vmatpush1.msra.mxu0 0.0
        %940 = vmatprep.subr.mxu0 0.0
        %941 = vmatpush1.msra.mxu0 0.0
        %942 = vmatprep.subr.mxu0 0.0
        %943 = vmatpush1.msra.mxu0 0.0
        %944 = vmatprep.subr.mxu0 0.0
        %945 = vmatpush1.msra.mxu0 0.0
        %946 = vmatprep.subr.mxu0 0.0
        %947 = vmatpush1.msra.mxu0 0.0
        %948 = vmatprep.subr.mxu0 0.0
        %949 = vmatpush1.msra.mxu0 0.0
        %950 = vmatprep.subr.mxu0 0.0
        %951 = vmatpush1.msra.mxu0 0.0
        %952 = vmatprep.subr.mxu0 0.0
        %953 = vmatpush1.msra.mxu0 0.0
        %954 = vmatprep.mubr.f32.mxu0 0.0
        %955 = vmatmul.mubr.f32.gmra.mrb[0].mxu0 %v888
        %v956 = vpop.f32.mrb[0].mxu0
        %v957 = vadd.f32 0.0, %v956
        %v958 = vpop.f32.mrb[0].mxu0
        %959 = vdwg.mxu0
        %960 = vst.msk [vmem:[#allocation5] sm:$0xff] %vm798, %v957
        %v961 = vld [vmem:[#allocation2] sm:$0xff]
        %v962 = vld [vmem:[#allocation3] sm:$0xff]
        %v963 = vld [vmem:[#allocation4] sm:$0xff]
        %965 = vrot.lane.b32.xlu0 %v961, 120
        %v966 = vpop.permute.xlu0 %965
        %968 = vrot.lane.b32.xlu0 %v962, 120
        %v969 = vpop.permute.xlu0 %968
        %v970 = vsel %vm798, %v966, 0
        %v972 = vsel %vm798, %v969, 0
        %974 = vmatprep.subr.mxu0 0.0
        %975 = vmatpush1.xpose.msra.mxu0 %v972
        %976 = vmatprep.subr.mxu0 0.0
        %977 = vmatpush1.xpose.msra.mxu0 0.0
        %978 = vmatprep.subr.mxu0 0.0
        %979 = vmatpush1.xpose.msra.mxu0 0.0
        %980 = vmatprep.subr.mxu0 0.0
        %981 = vmatpush1.xpose.msra.mxu0 0.0
        %982 = vmatprep.subr.mxu0 0.0
        %983 = vmatpush1.xpose.msra.mxu0 0.0
        %984 = vmatprep.subr.mxu0 0.0
        %985 = vmatpush1.xpose.msra.mxu0 0.0
        %986 = vmatprep.subr.mxu0 0.0
        %987 = vmatpush1.xpose.msra.mxu0 0.0
        %988 = vmatprep.subr.mxu0 0.0
        %989 = vmatpush1.xpose.msra.mxu0 0.0
        %990 = vmatprep.subr.mxu0 0.0
        %991 = vmatpush1.xpose.msra.mxu0 0.0
        %992 = vmatprep.subr.mxu0 0.0
        %993 = vmatpush1.xpose.msra.mxu0 0.0
        %994 = vmatprep.subr.mxu0 0.0
        %995 = vmatpush1.xpose.msra.mxu0 0.0
        %996 = vmatprep.subr.mxu0 0.0
        %997 = vmatpush1.xpose.msra.mxu0 0.0
        %998 = vmatprep.subr.mxu0 0.0
        %999 = vmatpush1.xpose.msra.mxu0 0.0
        %1000 = vmatprep.subr.mxu0 0.0
        %1001 = vmatpush1.xpose.msra.mxu0 0.0
        %1002 = vmatprep.subr.mxu0 0.0
        %1003 = vmatpush1.xpose.msra.mxu0 0.0
        %1004 = vmatprep.subr.mxu0 0.0
        %1005 = vmatpush1.xpose.msra.mxu0 0.0
        %1006 = vmatprep.subr.mxu0 0.0
        %1007 = vmatpush1.xpose.msra.mxu0 0.0
        %1008 = vmatprep.subr.mxu0 0.0
        %1009 = vmatpush1.xpose.msra.mxu0 0.0
        %1010 = vmatprep.subr.mxu0 0.0
        %1011 = vmatpush1.xpose.msra.mxu0 0.0
        %1012 = vmatprep.subr.mxu0 0.0
        %1013 = vmatpush1.xpose.msra.mxu0 0.0
        %1014 = vmatprep.subr.mxu0 0.0
        %1015 = vmatpush1.xpose.msra.mxu0 0.0
        %1016 = vmatprep.subr.mxu0 0.0
        %1017 = vmatpush1.xpose.msra.mxu0 0.0
        %1018 = vmatprep.subr.mxu0 0.0
        %1019 = vmatpush1.xpose.msra.mxu0 0.0
        %1020 = vmatprep.subr.mxu0 0.0
        %1021 = vmatpush1.xpose.msra.mxu0 0.0
        %1022 = vmatprep.subr.mxu0 0.0
        %1023 = vmatpush1.xpose.msra.mxu0 0.0
        %1024 = vmatprep.subr.mxu0 0.0
        %1025 = vmatpush1.xpose.msra.mxu0 0.0
        %1026 = vmatprep.subr.mxu0 0.0
        %1027 = vmatpush1.xpose.msra.mxu0 0.0
        %1028 = vmatprep.subr.mxu0 0.0
        %1029 = vmatpush1.xpose.msra.mxu0 0.0
        %1030 = vmatprep.subr.mxu0 0.0
        %1031 = vmatpush1.xpose.msra.mxu0 0.0
        %1032 = vmatprep.subr.mxu0 0.0
        %1033 = vmatpush1.xpose.msra.mxu0 0.0
        %1034 = vmatprep.subr.mxu0 0.0
        %1035 = vmatpush1.xpose.msra.mxu0 0.0
        %1036 = vmatprep.subr.mxu0 0.0
        %1037 = vmatpush1.xpose.msra.mxu0 0.0
        %1038 = vmatprep.mubr.f32.mxu0 0.0
        %1039 = vmatmul.mubr.f32.gmra.mrb[0].mxu0 %v970
        %v1040 = vpop.f32.mrb[0].mxu0
        %v1041 = vadd.f32 0.0, %v1040
        %v1042 = vpop.f32.mrb[0].mxu0
        %1043 = vdwg.mxu0
        %v1044 = vsel %vm794, -1e+09, %v1041
        %v1045 = vsel %vm798, %v1044, -inf
        %1046 = vmax.xlane.f32.xlu0 %v1045
        %v1047 = vpop.xlane.xlu0 %1046
        %v1048 = vsub.f32 %v1044, %v1047
        %v1049 = vmul.f32 %v1048, 1.442695
        %v1050 = vpow.pop %v1049
        %v1051 = vsel %vm798, %v1050, 0.0
        %1052 = vadd.xlane.f32.xlu0 %v1051
        %v1053 = vpop.xlane.xlu0 %1052
        %v1054 = vrcp.pop %v1053
        %v1055 = vmul.f32 %v1050, %v1054
        %1057 = vrot.lane.b32.xlu0 %v963, 120
        %v1058 = vpop.permute.xlu0 %1057
        %v1061 = vsel %vm798, %v1055, 0
        %1063 = vmatprep.subr.mxu0 0.0
        %1064 = vmatpush1.msra.mxu0 %v1058
        %1065 = vmatprep.subr.mxu0 0.0
        %1066 = vmatpush1.msra.mxu0 0.0
        %1067 = vmatprep.subr.mxu0 0.0
        %1068 = vmatpush1.msra.mxu0 0.0
        %1069 = vmatprep.subr.mxu0 0.0
        %1070 = vmatpush1.msra.mxu0 0.0
        %1071 = vmatprep.subr.mxu0 0.0
        %1072 = vmatpush1.msra.mxu0 0.0
        %1073 = vmatprep.subr.mxu0 0.0
        %1074 = vmatpush1.msra.mxu0 0.0
        %1075 = vmatprep.subr.mxu0 0.0
        %1076 = vmatpush1.msra.mxu0 0.0
        %1077 = vmatprep.subr.mxu0 0.0
        %1078 = vmatpush1.msra.mxu0 0.0
        %1079 = vmatprep.subr.mxu0 0.0
        %1080 = vmatpush1.msra.mxu0 0.0
        %1081 = vmatprep.subr.mxu0 0.0
        %1082 = vmatpush1.msra.mxu0 0.0
        %1083 = vmatprep.subr.mxu0 0.0
        %1084 = vmatpush1.msra.mxu0 0.0
        %1085 = vmatprep.subr.mxu0 0.0
        %1086 = vmatpush1.msra.mxu0 0.0
        %1087 = vmatprep.subr.mxu0 0.0
        %1088 = vmatpush1.msra.mxu0 0.0
        %1089 = vmatprep.subr.mxu0 0.0
        %1090 = vmatpush1.msra.mxu0 0.0
        %1091 = vmatprep.subr.mxu0 0.0
        %1092 = vmatpush1.msra.mxu0 0.0
        %1093 = vmatprep.subr.mxu0 0.0
        %1094 = vmatpush1.msra.mxu0 0.0
        %1095 = vmatprep.subr.mxu0 0.0
        %1096 = vmatpush1.msra.mxu0 0.0
        %1097 = vmatprep.subr.mxu0 0.0
        %1098 = vmatpush1.msra.mxu0 0.0
        %1099 = vmatprep.subr.mxu0 0.0
        %1100 = vmatpush1.msra.mxu0 0.0
        %1101 = vmatprep.subr.mxu0 0.0
        %1102 = vmatpush1.msra.mxu0 0.0
        %1103 = vmatprep.subr.mxu0 0.0
        %1104 = vmatpush1.msra.mxu0 0.0
        %1105 = vmatprep.subr.mxu0 0.0
        %1106 = vmatpush1.msra.mxu0 0.0
        %1107 = vmatprep.subr.mxu0 0.0
        %1108 = vmatpush1.msra.mxu0 0.0
        %1109 = vmatprep.subr.mxu0 0.0
        %1110 = vmatpush1.msra.mxu0 0.0
        %1111 = vmatprep.subr.mxu0 0.0
        %1112 = vmatpush1.msra.mxu0 0.0
        %1113 = vmatprep.subr.mxu0 0.0
        %1114 = vmatpush1.msra.mxu0 0.0
        %1115 = vmatprep.subr.mxu0 0.0
        %1116 = vmatpush1.msra.mxu0 0.0
        %1117 = vmatprep.subr.mxu0 0.0
        %1118 = vmatpush1.msra.mxu0 0.0
        %1119 = vmatprep.subr.mxu0 0.0
        %1120 = vmatpush1.msra.mxu0 0.0
        %1121 = vmatprep.subr.mxu0 0.0
        %1122 = vmatpush1.msra.mxu0 0.0
        %1123 = vmatprep.subr.mxu0 0.0
        %1124 = vmatpush1.msra.mxu0 0.0
        %1125 = vmatprep.subr.mxu0 0.0
        %1126 = vmatpush1.msra.mxu0 0.0
        %1127 = vmatprep.mubr.f32.mxu0 0.0
        %1128 = vmatmul.mubr.f32.gmra.mrb[0].mxu0 %v1061
        %v1129 = vpop.f32.mrb[0].mxu0
        %v1130 = vadd.f32 0.0, %v1129
        %v1131 = vpop.f32.mrb[0].mxu0
        %1132 = vdwg.mxu0
        %1134 = vrot.lane.b32.xlu0 %v1130, 8
        %v1135 = vpop.permute.xlu0 %1134
        %vm1137 = vcmask 130112
        %1138 = vst.msk [vmem:[#allocation5] sm:$0xff] %vm1137, %v1135
        %v1139 = vld [vmem:[#allocation2] sm:$0xff]
        %v1140 = vld [vmem:[#allocation3] sm:$0xff]
        %v1141 = vld [vmem:[#allocation4] sm:$0xff]
        %1143 = vrot.lane.b32.xlu0 %v1139, 112
        %v1144 = vpop.permute.xlu0 %1143
        %1146 = vrot.lane.b32.xlu0 %v1140, 112
        %v1147 = vpop.permute.xlu0 %1146
        %v1148 = vsel %vm798, %v1144, 0
        %v1150 = vsel %vm798, %v1147, 0
        %1152 = vmatprep.subr.mxu0 0.0
        %1153 = vmatpush1.xpose.msra.mxu0 %v1150
        %1154 = vmatprep.subr.mxu0 0.0
        %1155 = vmatpush1.xpose.msra.mxu0 0.0
        %1156 = vmatprep.subr.mxu0 0.0
        %1157 = vmatpush1.xpose.msra.mxu0 0.0
        %1158 = vmatprep.subr.mxu0 0.0
        %1159 = vmatpush1.xpose.msra.mxu0 0.0
        %1160 = vmatprep.subr.mxu0 0.0
        %1161 = vmatpush1.xpose.msra.mxu0 0.0
        %1162 = vmatprep.subr.mxu0 0.0
        %1163 = vmatpush1.xpose.msra.mxu0 0.0
        %1164 = vmatprep.subr.mxu0 0.0
        %1165 = vmatpush1.xpose.msra.mxu0 0.0
        %1166 = vmatprep.subr.mxu0 0.0
        %1167 = vmatpush1.xpose.msra.mxu0 0.0
        %1168 = vmatprep.subr.mxu0 0.0
        %1169 = vmatpush1.xpose.msra.mxu0 0.0
        %1170 = vmatprep.subr.mxu0 0.0
        %1171 = vmatpush1.xpose.msra.mxu0 0.0
        %1172 = vmatprep.subr.mxu0 0.0
        %1173 = vmatpush1.xpose.msra.mxu0 0.0
        %1174 = vmatprep.subr.mxu0 0.0
        %1175 = vmatpush1.xpose.msra.mxu0 0.0
        %1176 = vmatprep.subr.mxu0 0.0
        %1177 = vmatpush1.xpose.msra.mxu0 0.0
        %1178 = vmatprep.subr.mxu0 0.0
        %1179 = vmatpush1.xpose.msra.mxu0 0.0
        %1180 = vmatprep.subr.mxu0 0.0
        %1181 = vmatpush1.xpose.msra.mxu0 0.0
        %1182 = vmatprep.subr.mxu0 0.0
        %1183 = vmatpush1.xpose.msra.mxu0 0.0
        %1184 = vmatprep.subr.mxu0 0.0
        %1185 = vmatpush1.xpose.msra.mxu0 0.0
        %1186 = vmatprep.subr.mxu0 0.0
        %1187 = vmatpush1.xpose.msra.mxu0 0.0
        %1188 = vmatprep.subr.mxu0 0.0
        %1189 = vmatpush1.xpose.msra.mxu0 0.0
        %1190 = vmatprep.subr.mxu0 0.0
        %1191 = vmatpush1.xpose.msra.mxu0 0.0
        %1192 = vmatprep.subr.mxu0 0.0
        %1193 = vmatpush1.xpose.msra.mxu0 0.0
        %1194 = vmatprep.subr.mxu0 0.0
        %1195 = vmatpush1.xpose.msra.mxu0 0.0
        %1196 = vmatprep.subr.mxu0 0.0
        %1197 = vmatpush1.xpose.msra.mxu0 0.0
        %1198 = vmatprep.subr.mxu0 0.0
        %1199 = vmatpush1.xpose.msra.mxu0 0.0
        %1200 = vmatprep.subr.mxu0 0.0
        %1201 = vmatpush1.xpose.msra.mxu0 0.0
        %1202 = vmatprep.subr.mxu0 0.0
        %1203 = vmatpush1.xpose.msra.mxu0 0.0
        %1204 = vmatprep.subr.mxu0 0.0
        %1205 = vmatpush1.xpose.msra.mxu0 0.0
        %1206 = vmatprep.subr.mxu0 0.0
        %1207 = vmatpush1.xpose.msra.mxu0 0.0
        %1208 = vmatprep.subr.mxu0 0.0
        %1209 = vmatpush1.xpose.msra.mxu0 0.0
        %1210 = vmatprep.subr.mxu0 0.0
        %1211 = vmatpush1.xpose.msra.mxu0 0.0
        %1212 = vmatprep.subr.mxu0 0.0
        %1213 = vmatpush1.xpose.msra.mxu0 0.0
        %1214 = vmatprep.subr.mxu0 0.0
        %1215 = vmatpush1.xpose.msra.mxu0 0.0
        %1216 = vmatprep.mubr.f32.mxu0 0.0
        %1217 = vmatmul.mubr.f32.gmra.mrb[0].mxu0 %v1148
        %v1218 = vpop.f32.mrb[0].mxu0
        %v1219 = vadd.f32 0.0, %v1218
        %v1220 = vpop.f32.mrb[0].mxu0
        %1221 = vdwg.mxu0
        %v1222 = vsel %vm794, -1e+09, %v1219
        %v1223 = vsel %vm798, %v1222, -inf
        %1224 = vmax.xlane.f32.xlu0 %v1223
        %v1225 = vpop.xlane.xlu0 %1224
        %v1226 = vsub.f32 %v1222, %v1225
        %v1227 = vmul.f32 %v1226, 1.442695
        %v1228 = vpow.pop %v1227
        %v1229 = vsel %vm798, %v1228, 0.0
        %1230 = vadd.xlane.f32.xlu0 %v1229
        %v1231 = vpop.xlane.xlu0 %1230
        %v1232 = vrcp.pop %v1231
        %v1233 = vmul.f32 %v1228, %v1232
        %1235 = vrot.lane.b32.xlu0 %v1141, 112
        %v1236 = vpop.permute.xlu0 %1235
        %v1239 = vsel %vm798, %v1233, 0
        %1241 = vmatprep.subr.mxu0 0.0
        %1242 = vmatpush1.msra.mxu0 %v1236
        %1243 = vmatprep.subr.mxu0 0.0
        %1244 = vmatpush1.msra.mxu0 0.0
        %1245 = vmatprep.subr.mxu0 0.0
        %1246 = vmatpush1.msra.mxu0 0.0
        %1247 = vmatprep.subr.mxu0 0.0
        %1248 = vmatpush1.msra.mxu0 0.0
        %1249 = vmatprep.subr.mxu0 0.0
        %1250 = vmatpush1.msra.mxu0 0.0
        %1251 = vmatprep.subr.mxu0 0.0
        %1252 = vmatpush1.msra.mxu0 0.0
        %1253 = vmatprep.subr.mxu0 0.0
        %1254 = vmatpush1.msra.mxu0 0.0
        %1255 = vmatprep.subr.mxu0 0.0
        %1256 = vmatpush1.msra.mxu0 0.0
        %1257 = vmatprep.subr.mxu0 0.0
        %1258 = vmatpush1.msra.mxu0 0.0
        %1259 = vmatprep.subr.mxu0 0.0
        %1260 = vmatpush1.msra.mxu0 0.0
        %1261 = vmatprep.subr.mxu0 0.0
        %1262 = vmatpush1.msra.mxu0 0.0
        %1263 = vmatprep.subr.mxu0 0.0
        %1264 = vmatpush1.msra.mxu0 0.0
        %1265 = vmatprep.subr.mxu0 0.0
        %1266 = vmatpush1.msra.mxu0 0.0
        %1267 = vmatprep.subr.mxu0 0.0
        %1268 = vmatpush1.msra.mxu0 0.0
        %1269 = vmatprep.subr.mxu0 0.0
        %1270 = vmatpush1.msra.mxu0 0.0
        %1271 = vmatprep.subr.mxu0 0.0
        %1272 = vmatpush1.msra.mxu0 0.0
        %1273 = vmatprep.subr.mxu0 0.0
        %1274 = vmatpush1.msra.mxu0 0.0
        %1275 = vmatprep.subr.mxu0 0.0
        %1276 = vmatpush1.msra.mxu0 0.0
        %1277 = vmatprep.subr.mxu0 0.0
        %1278 = vmatpush1.msra.mxu0 0.0
        %1279 = vmatprep.subr.mxu0 0.0
        %1280 = vmatpush1.msra.mxu0 0.0
        %1281 = vmatprep.subr.mxu0 0.0
        %1282 = vmatpush1.msra.mxu0 0.0
        %1283 = vmatprep.subr.mxu0 0.0
        %1284 = vmatpush1.msra.mxu0 0.0
        %1285 = vmatprep.subr.mxu0 0.0
        %1286 = vmatpush1.msra.mxu0 0.0
        %1287 = vmatprep.subr.mxu0 0.0
        %1288 = vmatpush1.msra.mxu0 0.0
        %1289 = vmatprep.subr.mxu0 0.0
        %1290 = vmatpush1.msra.mxu0 0.0
        %1291 = vmatprep.subr.mxu0 0.0
        %1292 = vmatpush1.msra.mxu0 0.0
        %1293 = vmatprep.subr.mxu0 0.0
        %1294 = vmatpush1.msra.mxu0 0.0
        %1295 = vmatprep.subr.mxu0 0.0
        %1296 = vmatpush1.msra.mxu0 0.0
        %1297 = vmatprep.subr.mxu0 0.0
        %1298 = vmatpush1.msra.mxu0 0.0
        %1299 = vmatprep.subr.mxu0 0.0
        %1300 = vmatpush1.msra.mxu0 0.0
        %1301 = vmatprep.subr.mxu0 0.0
        %1302 = vmatpush1.msra.mxu0 0.0
        %1303 = vmatprep.subr.mxu0 0.0
        %1304 = vmatpush1.msra.mxu0 0.0
        %1305 = vmatprep.mubr.f32.mxu0 0.0
        %1306 = vmatmul.mubr.f32.gmra.mrb[0].mxu0 %v1239
        %v1307 = vpop.f32.mrb[0].mxu0
        %v1308 = vadd.f32 0.0, %v1307
        %v1309 = vpop.f32.mrb[0].mxu0
        %1310 = vdwg.mxu0
        %1312 = vrot.lane.b32.xlu0 %v1308, 16
        %v1313 = vpop.permute.xlu0 %1312
        %vm1315 = vcmask 195712
        %1316 = vst.msk [vmem:[#allocation5] sm:$0xff] %vm1315, %v1313
        %v1317 = vld [vmem:[#allocation2] sm:$0xff]
        %v1318 = vld [vmem:[#allocation3] sm:$0xff]
        %v1319 = vld [vmem:[#allocation4] sm:$0xff]
        %1321 = vrot.lane.b32.xlu0 %v1317, 104
        %v1322 = vpop.permute.xlu0 %1321
        %1324 = vrot.lane.b32.xlu0 %v1318, 104
        %v1325 = vpop.permute.xlu0 %1324
        %v1326 = vsel %vm798, %v1322, 0
        %v1328 = vsel %vm798, %v1325, 0
        %1330 = vmatprep.subr.mxu0 0.0
        %1331 = vmatpush1.xpose.msra.mxu0 %v1328
        %1332 = vmatprep.subr.mxu0 0.0
        %1333 = vmatpush1.xpose.msra.mxu0 0.0
        %1334 = vmatprep.subr.mxu0 0.0
        %1335 = vmatpush1.xpose.msra.mxu0 0.0
        %1336 = vmatprep.subr.mxu0 0.0
        %1337 = vmatpush1.xpose.msra.mxu0 0.0
        %1338 = vmatprep.subr.mxu0 0.0
        %1339 = vmatpush1.xpose.msra.mxu0 0.0
        %1340 = vmatprep.subr.mxu0 0.0
        %1341 = vmatpush1.xpose.msra.mxu0 0.0
        %1342 = vmatprep.subr.mxu0 0.0
        %1343 = vmatpush1.xpose.msra.mxu0 0.0
        %1344 = vmatprep.subr.mxu0 0.0
        %1345 = vmatpush1.xpose.msra.mxu0 0.0
        %1346 = vmatprep.subr.mxu0 0.0
        %1347 = vmatpush1.xpose.msra.mxu0 0.0
        %1348 = vmatprep.subr.mxu0 0.0
        %1349 = vmatpush1.xpose.msra.mxu0 0.0
        %1350 = vmatprep.subr.mxu0 0.0
        %1351 = vmatpush1.xpose.msra.mxu0 0.0
        %1352 = vmatprep.subr.mxu0 0.0
        %1353 = vmatpush1.xpose.msra.mxu0 0.0
        %1354 = vmatprep.subr.mxu0 0.0
        %1355 = vmatpush1.xpose.msra.mxu0 0.0
        %1356 = vmatprep.subr.mxu0 0.0
        %1357 = vmatpush1.xpose.msra.mxu0 0.0
        %1358 = vmatprep.subr.mxu0 0.0
        %1359 = vmatpush1.xpose.msra.mxu0 0.0
        %1360 = vmatprep.subr.mxu0 0.0
        %1361 = vmatpush1.xpose.msra.mxu0 0.0
        %1362 = vmatprep.subr.mxu0 0.0
        %1363 = vmatpush1.xpose.msra.mxu0 0.0
        %1364 = vmatprep.subr.mxu0 0.0
        %1365 = vmatpush1.xpose.msra.mxu0 0.0
        %1366 = vmatprep.subr.mxu0 0.0
        %1367 = vmatpush1.xpose.msra.mxu0 0.0
        %1368 = vmatprep.subr.mxu0 0.0
        %1369 = vmatpush1.xpose.msra.mxu0 0.0
        %1370 = vmatprep.subr.mxu0 0.0
        %1371 = vmatpush1.xpose.msra.mxu0 0.0
        %1372 = vmatprep.subr.mxu0 0.0
        %1373 = vmatpush1.xpose.msra.mxu0 0.0
        %1374 = vmatprep.subr.mxu0 0.0
        %1375 = vmatpush1.xpose.msra.mxu0 0.0
        %1376 = vmatprep.subr.mxu0 0.0
        %1377 = vmatpush1.xpose.msra.mxu0 0.0
        %1378 = vmatprep.subr.mxu0 0.0
        %1379 = vmatpush1.xpose.msra.mxu0 0.0
        %1380 = vmatprep.subr.mxu0 0.0
        %1381 = vmatpush1.xpose.msra.mxu0 0.0
        %1382 = vmatprep.subr.mxu0 0.0
        %1383 = vmatpush1.xpose.msra.mxu0 0.0
        %1384 = vmatprep.subr.mxu0 0.0
        %1385 = vmatpush1.xpose.msra.mxu0 0.0
        %1386 = vmatprep.subr.mxu0 0.0
        %1387 = vmatpush1.xpose.msra.mxu0 0.0
        %1388 = vmatprep.subr.mxu0 0.0
        %1389 = vmatpush1.xpose.msra.mxu0 0.0
        %1390 = vmatprep.subr.mxu0 0.0
        %1391 = vmatpush1.xpose.msra.mxu0 0.0
        %1392 = vmatprep.subr.mxu0 0.0
        %1393 = vmatpush1.xpose.msra.mxu0 0.0
        %1394 = vmatprep.mubr.f32.mxu0 0.0
        %1395 = vmatmul.mubr.f32.gmra.mrb[0].mxu0 %v1326
        %v1396 = vpop.f32.mrb[0].mxu0
        %v1397 = vadd.f32 0.0, %v1396
        %v1398 = vpop.f32.mrb[0].mxu0
        %1399 = vdwg.mxu0
        %v1400 = vsel %vm794, -1e+09, %v1397
        %v1401 = vsel %vm798, %v1400, -inf
        %1402 = vmax.xlane.f32.xlu0 %v1401
        %v1403 = vpop.xlane.xlu0 %1402
        %v1404 = vsub.f32 %v1400, %v1403
        %v1405 = vmul.f32 %v1404, 1.442695
        %v1406 = vpow.pop %v1405
        %v1407 = vsel %vm798, %v1406, 0.0
        %1408 = vadd.xlane.f32.xlu0 %v1407
        %v1409 = vpop.xlane.xlu0 %1408
        %v1410 = vrcp.pop %v1409
        %v1411 = vmul.f32 %v1406, %v1410
        %1413 = vrot.lane.b32.xlu0 %v1319, 104
        %v1414 = vpop.permute.xlu0 %1413
        %v1417 = vsel %vm798, %v1411, 0
        %1419 = vmatprep.subr.mxu0 0.0
        %1420 = vmatpush1.msra.mxu0 %v1414
        %1421 = vmatprep.subr.mxu0 0.0
        %1422 = vmatpush1.msra.mxu0 0.0
        %1423 = vmatprep.subr.mxu0 0.0
        %1424 = vmatpush1.msra.mxu0 0.0
        %1425 = vmatprep.subr.mxu0 0.0
        %1426 = vmatpush1.msra.mxu0 0.0
        %1427 = vmatprep.subr.mxu0 0.0
        %1428 = vmatpush1.msra.mxu0 0.0
        %1429 = vmatprep.subr.mxu0 0.0
        %1430 = vmatpush1.msra.mxu0 0.0
        %1431 = vmatprep.subr.mxu0 0.0
        %1432 = vmatpush1.msra.mxu0 0.0
        %1433 = vmatprep.subr.mxu0 0.0
        %1434 = vmatpush1.msra.mxu0 0.0
        %1435 = vmatprep.subr.mxu0 0.0
        %1436 = vmatpush1.msra.mxu0 0.0
        %1437 = vmatprep.subr.mxu0 0.0
        %1438 = vmatpush1.msra.mxu0 0.0
        %1439 = vmatprep.subr.mxu0 0.0
        %1440 = vmatpush1.msra.mxu0 0.0
        %1441 = vmatprep.subr.mxu0 0.0
        %1442 = vmatpush1.msra.mxu0 0.0
        %1443 = vmatprep.subr.mxu0 0.0
        %1444 = vmatpush1.msra.mxu0 0.0
        %1445 = vmatprep.subr.mxu0 0.0
        %1446 = vmatpush1.msra.mxu0 0.0
        %1447 = vmatprep.subr.mxu0 0.0
        %1448 = vmatpush1.msra.mxu0 0.0
        %1449 = vmatprep.subr.mxu0 0.0
        %1450 = vmatpush1.msra.mxu0 0.0
        %1451 = vmatprep.subr.mxu0 0.0
        %1452 = vmatpush1.msra.mxu0 0.0
        %1453 = vmatprep.subr.mxu0 0.0
        %1454 = vmatpush1.msra.mxu0 0.0
        %1455 = vmatprep.subr.mxu0 0.0
        %1456 = vmatpush1.msra.mxu0 0.0
        %1457 = vmatprep.subr.mxu0 0.0
        %1458 = vmatpush1.msra.mxu0 0.0
        %1459 = vmatprep.subr.mxu0 0.0
        %1460 = vmatpush1.msra.mxu0 0.0
        %1461 = vmatprep.subr.mxu0 0.0
        %1462 = vmatpush1.msra.mxu0 0.0
        %1463 = vmatprep.subr.mxu0 0.0
        %1464 = vmatpush1.msra.mxu0 0.0
        %1465 = vmatprep.subr.mxu0 0.0
        %1466 = vmatpush1.msra.mxu0 0.0
        %1467 = vmatprep.subr.mxu0 0.0
        %1468 = vmatpush1.msra.mxu0 0.0
        %1469 = vmatprep.subr.mxu0 0.0
        %1470 = vmatpush1.msra.mxu0 0.0
        %1471 = vmatprep.subr.mxu0 0.0
        %1472 = vmatpush1.msra.mxu0 0.0
        %1473 = vmatprep.subr.mxu0 0.0
        %1474 = vmatpush1.msra.mxu0 0.0
        %1475 = vmatprep.subr.mxu0 0.0
        %1476 = vmatpush1.msra.mxu0 0.0
        %1477 = vmatprep.subr.mxu0 0.0
        %1478 = vmatpush1.msra.mxu0 0.0
        %1479 = vmatprep.subr.mxu0 0.0
        %1480 = vmatpush1.msra.mxu0 0.0
        %1481 = vmatprep.subr.mxu0 0.0
        %1482 = vmatpush1.msra.mxu0 0.0
        %1483 = vmatprep.mubr.f32.mxu0 0.0
        %1484 = vmatmul.mubr.f32.gmra.mrb[0].mxu0 %v1417
        %v1485 = vpop.f32.mrb[0].mxu0
        %v1486 = vadd.f32 0.0, %v1485
        %v1487 = vpop.f32.mrb[0].mxu0
        %1488 = vdwg.mxu0
        %1490 = vrot.lane.b32.xlu0 %v1486, 24
        %v1491 = vpop.permute.xlu0 %1490
        %vm1493 = vcmask 261312
        %1494 = vst.msk [vmem:[#allocation5] sm:$0xff] %vm1493, %v1491
        %v1495 = vld [vmem:[#allocation5] sm:$0xff]
        %v1496 = vpack.c.bf16 %v1495, %v1495
        %v1497 = vld [vmem:[%s10] sm:$0xf]
        %v1498 = vld [vmem:[%s10 + $0x4] sm:$0xf]
        %v1499 = vld [vmem:[%s10 + $0x8] sm:$0xf]
        %v1500 = vld [vmem:[%s10 + $0xc] sm:$0xf]
        %v1501 = vld [vmem:[%s11] sm:$0x1]
        %v1503 = vlaneseq
        %v1504 = vshrl.u32 %v1503, 7
        %v1505 = vsub.s32 0, %v1504
        %v1506 = vrot.slane %v1501, %v1505
        %v1512 = vunpack.c.l.b16 %v1497
        %v1513 = vunpack.c.l.b16 %v1498
        %v1514 = vunpack.c.l.b16 %v1499
        %v1515 = vunpack.c.l.b16 %v1500
        %v1516 = vpack.c.b16 %v1513, %v1512
        %v1517 = vpack.c.b16 %v1515, %v1514
        %v1521 = vsel %vm606, %v1496, 0
        %1523 = vmatprep.subr.bf16.mxu0 0
        %1524 = vmatpush1.bf16.msra.mxu0 %v1516
        %1525 = vmatprep.subr.bf16.mxu0 0
        %1526 = vmatpush1.bf16.msra.mxu0 %v1517
        %1527 = vmatprep.subr.bf16.mxu0 0
        %1528 = vmatpush1.bf16.msra.mxu0 0
        %1529 = vmatprep.subr.bf16.mxu0 0
        %1530 = vmatpush1.bf16.msra.mxu0 0
        %1531 = vmatprep.subr.bf16.mxu0 0
        %1532 = vmatpush1.bf16.msra.mxu0 0
        %1533 = vmatprep.subr.bf16.mxu0 0
        %1534 = vmatpush1.bf16.msra.mxu0 0
        %1535 = vmatprep.subr.bf16.mxu0 0
        %1536 = vmatpush1.bf16.msra.mxu0 0
        %1537 = vmatprep.subr.bf16.mxu0 0
        %1538 = vmatpush1.bf16.msra.mxu0 0
        %1539 = vmatprep.subr.bf16.mxu0 0
        %1540 = vmatpush1.bf16.msra.mxu0 0
        %1541 = vmatprep.subr.bf16.mxu0 0
        %1542 = vmatpush1.bf16.msra.mxu0 0
        %1543 = vmatprep.subr.bf16.mxu0 0
        %1544 = vmatpush1.bf16.msra.mxu0 0
        %1545 = vmatprep.subr.bf16.mxu0 0
        %1546 = vmatpush1.bf16.msra.mxu0 0
        %1547 = vmatprep.subr.bf16.mxu0 0
        %1548 = vmatpush1.bf16.msra.mxu0 0
        %1549 = vmatprep.subr.bf16.mxu0 0
        %1550 = vmatpush1.bf16.msra.mxu0 0
        %1551 = vmatprep.subr.bf16.mxu0 0
        %1552 = vmatpush1.bf16.msra.mxu0 0
        %1553 = vmatprep.subr.bf16.mxu0 0
        %1554 = vmatpush1.bf16.msra.mxu0 0
        %1555 = vmatprep.mubr.bf16.mxu0 0
        %1556 = vmatmul.mubr.bf16.gmra.mrb[0].mxu0 %v1521
        %v1557 = vpop.f32.mrb[0].mxu0
        %v1558 = vadd.f32 %v1506, %v1557
        %v1559 = vpop.f32.mrb[0].mxu0
        %v1560 = vpop.f32.mrb[0].mxu0
        %v1561 = vpop.f32.mrb[0].mxu0
        %1562 = vdwg.mxu0
        %1563 = vst.msk [vmem:[%s577] sm:$0xff] %vm606, %v1558
        %s1564 = sand.u32 %s315, 1
        %s1565 = scalar_lea.sflag [#allocation8], %s1564
        %s1566 = sand.u32 %s315, 1
        %s1567 = smul.addr %s1566, 8
        %s1568 = scalar_lea.vmem [#allocation20], %s1567
        // Predicated region
        $region101: #{tpu_custom_call.1} parent=67 // pred_check
          %p1569 = pneg %p325
        $region102: #{tpu_custom_call.1} parent=67 // pred_check_branch
          %1571 = sbr.rel (%p1569) target = $region104
        $region103: #{tpu_custom_call.1} parent=67 // pred_region
          %s1573 = ssub.s32 128, 128
          %1574 = vsyncadd %s1565, %s1573
          %s1575 = smul.addr %s35, 128
          %s1576 = scalar_lea.hbm %s12, %s1575
          %s1578 = sshll.u32 %s1568, 4
          %s1579 = int_to_ptr.vmem [resolvable:$true] %s1578
          %1581 = dma.vmem_to_hbm [thread:$0]  %s1579, 128, %s1576, %s1565
        $region104: #{tpu_custom_call.1} parent=67 // pred_fallthru
          _
      $region68: #{tpu_custom_call.1} parent=5 // pred_fallthru
        _
      %p1582 = scmp.le.s32.totalorder 2, %s30
      // Predicated region
      $region105: #{tpu_custom_call.1} parent=5 // pred_check
        %p1583 = pneg %p1582
      $region106: #{tpu_custom_call.1} parent=5 // pred_check_branch
        %1585 = sbr.rel (%p1583) target = $region108
      $region107: #{tpu_custom_call.1} parent=5 // pred_region
        %s1586 = ssub.s32 %s30, 2
        // Predicated region
        $region109: #{tpu_custom_call.1} parent=107 // pred_check
          %p1587 = pneg %p331
        $region110: #{tpu_custom_call.1} parent=107 // pred_check_branch
          %1589 = sbr.rel (%p1587) target = $region112
        $region111: #{tpu_custom_call.1} parent=107 // pred_region
          %s1590 = sand.u32 %s316, 1
          %s1591 = scalar_lea.sflag [#allocation8], %s1590
          %s1592 = sand.u32 %s316, 1
          %s1593 = smul.addr %s1592, 8
          %s1594 = scalar_lea.vmem [#allocation20], %s1593
          %1595 = dma.done %s1591, 128
        $region112: #{tpu_custom_call.1} parent=107 // pred_fallthru
          _
      $region108: #{tpu_custom_call.1} parent=5 // pred_fallthru
        _
    $region6: #{tpu_custom_call.1} parent=1 // loop_footer
      %s34 = sadd.s32 1, %s30
    $region7: #{tpu_custom_call.1} parent=1 // loop_footer_branch
      %29 = sbr.rel target = $region3
    $region8: #{tpu_custom_call.1} parent=1 // loop_exit
      _
    %1596 = vsyncpa [#allocation7], 1
    %s1597 = scalar_lea.sflag [#allocation7], 1
    %1598 = vsyncpa %s1597, 1
    %1599 = vsyncpa [#allocation10], 1
    %s1600 = scalar_lea.sflag [#allocation10], 1
    %1601 = vsyncpa %s1600, 1
    %1602 = vsyncpa [#allocation13], 1
    %1603 = vsyncpa [#allocation16], 1
    %1604 = vsyncpa [#allocation19], 1
    %1605 = vsyncpa [#allocation8], 1
    %s1606 = scalar_lea.sflag [#allocation8], 1
    %1607 = vsyncpa %s1606, 1

</llo_original>
